<compile_context>
chip_gen: v5e
topology: v5e:2x2
jax: 0.10.0
libtpu: 0.0.40
codegen_flags: <defaults>
</compile_context>

<pallas_src>
import functools

import jax
import jax.numpy as jnp
from jax import lax
from jax.experimental import pallas as pl
from jax.experimental.pallas import tpu as pltpu  # noqa: F401  (TPU backend)


# ----------------------------------------------------------------------------
# Fused Pallas kernel: conv1 -> conv2 -> num_layers x LSTM -> FC
# ----------------------------------------------------------------------------
def _fused_convlstm_kernel(x_ref, cw1_ref, cb1_ref, cw2_ref, cb2_ref,
                           *rest, T, B, H, num_layers):
    # rest = [wih_0, whh_0, b_0, ..., wih_{L-1}, whh_{L-1}, b_{L-1}, fcw, fcb, out]
    lstm_refs = rest[:3 * num_layers]
    fcw_ref, fcb_ref, out_ref = rest[3 * num_layers:]

    f32 = jnp.float32
    BT = T * B

    # ---- +/-1 time-shift operators for the padded conv, in time-major flat
    #      layout (row r = t*B + b). Built from iota so they lower trivially.
    row = lax.broadcasted_iota(jnp.int32, (BT, BT), 0)
    col = lax.broadcasted_iota(jnp.int32, (BT, BT), 1)
    s_prev = jnp.where((col == row - B) & (row >= B), 1.0, 0.0).astype(f32)
    s_next = jnp.where((col == row + B) & (row < (T - 1) * B), 1.0, 0.0).astype(f32)

    def conv_relu(h, w_ref, b_ref):
        # h: (BT, Cin); w_ref: (3, Cin, Cout) taps; b_ref: (1, Cout)
        y0 = jnp.dot(h, w_ref[0], preferred_element_type=f32)   # tap k=0 (t-1)
        y1 = jnp.dot(h, w_ref[1], preferred_element_type=f32)   # tap k=1 (t)
        y2 = jnp.dot(h, w_ref[2], preferred_element_type=f32)   # tap k=2 (t+1)
        y = (jnp.dot(s_prev, y0, preferred_element_type=f32)
             + y1
             + jnp.dot(s_next, y2, preferred_element_type=f32)
             + b_ref[...])
        return jnp.maximum(y, 0.0)

    h = conv_relu(x_ref[...], cw1_ref, cb1_ref)          # (BT, 16)
    h = conv_relu(h, cw2_ref, cb2_ref)                   # (BT, 32)

    # ---- layer-0 input projection hoisted out of the serial recurrence.
    xp0 = (jnp.dot(h, lstm_refs[0][...], preferred_element_type=f32)
           + lstm_refs[2][...])                          # (BT, 4H)

    hs = [jnp.zeros((B, H), f32) for _ in range(num_layers)]
    cs = [jnp.zeros((B, H), f32) for _ in range(num_layers)]

    def cell(gates, c_prev):
        # PyTorch gate order: [i, f, g, o]
        i = jax.nn.sigmoid(gates[:, 0 * H:1 * H])
        f = jax.nn.sigmoid(gates[:, 1 * H:2 * H])
        g = jnp.tanh(gates[:, 2 * H:3 * H])
        o = jax.nn.sigmoid(gates[:, 3 * H:4 * H])
        c_new = f * c_prev + i * g
        h_new = o * jnp.tanh(c_new)
        return h_new, c_new

    # ---- fully unrolled time loop; all layers fused inside one step so the
    #      inter-layer hidden sequence never touches HBM.
    for t in range(T):
        layer_in = None
        for l in range(num_layers):
            whh = lstm_refs[3 * l + 1][...]              # (H, 4H)
            if l == 0:
                gates = (xp0[t * B:(t + 1) * B, :]
                         + jnp.dot(hs[0], whh, preferred_element_type=f32))
            else:
                wih = lstm_refs[3 * l][...]              # (H, 4H)
                b_l = lstm_refs[3 * l + 2][...]          # (1, 4H)
                gates = (jnp.dot(layer_in, wih, preferred_element_type=f32)
                         + jnp.dot(hs[l], whh, preferred_element_type=f32)
                         + b_l)
            hs[l], cs[l] = cell(gates, cs[l])
            layer_in = hs[l]

    out = jnp.dot(hs[-1], fcw_ref[...], preferred_element_type=f32) + fcb_ref[...]
    out_ref[...] = out.astype(out_ref.dtype)


# ----------------------------------------------------------------------------
# Wrapper: weight re-layout + single pallas_call
# ----------------------------------------------------------------------------
def convlstm_forward(x, params, num_layers):
    """x: (B, T, input_size) -> (B, output_size)."""
    B, T, Cin = x.shape
    H = params["w_hh_0"].shape[1]
    out_dim = params["fc_w"].shape[0]
    f32 = jnp.float32

    # time-major flattened input: row r = t*B + b
    x_flat = jnp.transpose(x, (1, 0, 2)).reshape(T * B, Cin).astype(f32)

    def taps(w):  # (Cout, Cin, 3) -> (3, Cin, Cout)
        return jnp.transpose(w, (2, 1, 0)).astype(f32)

    args = [
        x_flat,
        taps(params["conv1_w"]), params["conv1_b"].reshape(1, -1).astype(f32),
        taps(params["conv2_w"]), params["conv2_b"].reshape(1, -1).astype(f32),
    ]
    for l in range(num_layers):
        args.append(jnp.transpose(params[f"w_ih_{l}"]).astype(f32))   # (D, 4H)
        args.append(jnp.transpose(params[f"w_hh_{l}"]).astype(f32))   # (H, 4H)
        args.append((params[f"b_ih_{l}"] + params[f"b_hh_{l}"])
                    .reshape(1, -1).astype(f32))                       # (1, 4H)
    args.append(jnp.transpose(params["fc_w"]).astype(f32))             # (H, out)
    args.append(params["fc_b"].reshape(1, -1).astype(f32))             # (1, out)

    kernel = functools.partial(_fused_convlstm_kernel,
                               T=T, B=B, H=H, num_layers=num_layers)
    return pl.pallas_call(
        kernel,
        out_shape=jax.ShapeDtypeStruct((B, out_dim), f32),
    )(*args)


# ----------------------------------------------------------------------------
# Pure-JAX reference (for correctness check)
# ----------------------------------------------------------------------------
def convlstm_reference(x, params, num_layers):
    def conv(x, w, b):
        B, T, Cin = x.shape
        xp = jnp.pad(x, ((0, 0), (1, 1), (0, 0)))
        cols = jnp.concatenate([xp[:, k:k + T, :] for k in range(3)], axis=-1)
        wmat = jnp.transpose(w, (2, 1, 0)).reshape(3 * Cin, w.shape[0])
        return jax.nn.relu(jnp.einsum("btk,kc->btc", cols, wmat) + b)

    h = conv(x, params["conv1_w"], params["conv1_b"])
    h = conv(h, params["conv2_w"], params["conv2_b"])

    def lstm(seq, w_ih, w_hh, b_ih, b_hh):
        H = w_hh.shape[1]
        B = seq.shape[1]

        def step(carry, x_t):
            hprev, cprev = carry
            gates = x_t @ w_ih.T + hprev @ w_hh.T + b_ih + b_hh
            i = jax.nn.sigmoid(gates[:, 0 * H:1 * H])
            f = jax.nn.sigmoid(gates[:, 1 * H:2 * H])
            g = jnp.tanh(gates[:, 2 * H:3 * H])
            o = jax.nn.sigmoid(gates[:, 3 * H:4 * H])
            c = f * cprev + i * g
            hh = o * jnp.tanh(c)
            return (hh, c), hh

        init = (jnp.zeros((B, H)), jnp.zeros((B, H)))
        _, hs = jax.lax.scan(step, init, seq)
        return hs

    seq = jnp.transpose(h, (1, 0, 2))
    for l in range(num_layers):
        seq = lstm(seq, params[f"w_ih_{l}"], params[f"w_hh_{l}"],
                   params[f"b_ih_{l}"], params[f"b_hh_{l}"])
    return seq[-1] @ params["fc_w"].T + params["fc_b"]


# ----------------------------------------------------------------------------
# Deterministic parameter init (shapes match the PyTorch module)
# ----------------------------------------------------------------------------
def init_params(key, input_size, hidden_size, num_layers, output_size):
    ks = iter(jax.random.split(key, 32))

    def u(shape, fan_in):
        bound = 1.0 / jnp.sqrt(fan_in)
        return jax.random.uniform(next(ks), shape, jnp.float32, -bound, bound)

    p = {}
    p["conv1_w"] = u((16, input_size, 3), input_size * 3)
    p["conv1_b"] = u((16,), input_size * 3)
    p["conv2_w"] = u((32, 16, 3), 16 * 3)
    p["conv2_b"] = u((32,), 16 * 3)
    for l in range(num_layers):
        d_in = 32 if l == 0 else hidden_size
        p[f"w_ih_{l}"] = u((4 * hidden_size, d_in), hidden_size)
        p[f"w_hh_{l}"] = u((4 * hidden_size, hidden_size), hidden_size)
        p[f"b_ih_{l}"] = u((4 * hidden_size,), hidden_size)
        p[f"b_hh_{l}"] = u((4 * hidden_size,), hidden_size)
    p["fc_w"] = u((output_size, hidden_size), hidden_size)
    p["fc_b"] = u((output_size,), hidden_size)
    return p


if __name__ == "__main__":
    B, T, INPUT_SIZE = 2, 8, 4
    HIDDEN, NUM_LAYERS, OUTPUT = 32, 2, 1

    key = jax.random.PRNGKey(0)
    k_x, k_p = jax.random.split(key)
    x = jax.random.normal(k_x, (B, T, INPUT_SIZE), jnp.float32)
    params = init_params(k_p, INPUT_SIZE, HIDDEN, NUM_LAYERS, OUTPUT)

    out = convlstm_forward(x, params, NUM_LAYERS)
    out = jax.block_until_ready(out)

    ref = convlstm_reference(x, params, NUM_LAYERS)
    assert out.shape == (B, OUTPUT), out.shape
    assert jnp.allclose(out, ref, atol=1e-4, rtol=1e-4), (out, ref)

    print("KERNEL_OK")
</pallas_src>

<mosaic_0001>
module attributes {stable_mosaic.version = 11 : i64} {
  func.func @_fused_convlstm_kernel(%arg0: memref<16x4xf32, #tpu.memory_space<vmem>>, %arg1: memref<3x4x16xf32, #tpu.memory_space<vmem>>, %arg2: memref<1x16xf32, #tpu.memory_space<vmem>>, %arg3: memref<3x16x32xf32, #tpu.memory_space<vmem>>, %arg4: memref<1x32xf32, #tpu.memory_space<vmem>>, %arg5: memref<32x128xf32, #tpu.memory_space<vmem>>, %arg6: memref<32x128xf32, #tpu.memory_space<vmem>>, %arg7: memref<1x128xf32, #tpu.memory_space<vmem>>, %arg8: memref<32x128xf32, #tpu.memory_space<vmem>>, %arg9: memref<32x128xf32, #tpu.memory_space<vmem>>, %arg10: memref<1x128xf32, #tpu.memory_space<vmem>>, %arg11: memref<32x1xf32, #tpu.memory_space<vmem>>, %arg12: memref<1x1xf32, #tpu.memory_space<vmem>>, %arg13: memref<2x1xf32, #tpu.memory_space<vmem>>) attributes {dimension_semantics = [], scalar_prefetch = 0 : i64, scratch_operands = 0 : i64, tpu.core_type = #tpu.core_type<tc>} {
    %0 = tpu.iota {dimensions = array<i32: 0>} : vector<16x16xi32>
    %1 = tpu.iota {dimensions = array<i32: 1>} : vector<16x16xi32>
    %c2_i32 = arith.constant 2 : i32
    %2 = vector.broadcast %c2_i32 : i32 to vector<16x16xi32>
    %3 = arith.subi %0, %2 : vector<16x16xi32>
    %4 = arith.cmpi eq, %1, %3 : vector<16x16xi32>
    %c2_i32_0 = arith.constant 2 : i32
    %5 = vector.broadcast %c2_i32_0 : i32 to vector<16x16xi32>
    %6 = arith.cmpi sge, %0, %5 : vector<16x16xi32>
    %7 = arith.andi %4, %6 : vector<16x16xi1>
    %cst = arith.constant 1.000000e+00 : f32
    %cst_1 = arith.constant 0.000000e+00 : f32
    %8 = vector.broadcast %cst : f32 to vector<16x16xf32>
    %9 = vector.broadcast %cst_1 : f32 to vector<16x16xf32>
    %10 = arith.select %7, %8, %9 : vector<16x16xi1>, vector<16x16xf32>
    %c2_i32_2 = arith.constant 2 : i32
    %11 = vector.broadcast %c2_i32_2 : i32 to vector<16x16xi32>
    %12 = arith.addi %0, %11 : vector<16x16xi32>
    %13 = arith.cmpi eq, %1, %12 : vector<16x16xi32>
    %c14_i32 = arith.constant 14 : i32
    %14 = vector.broadcast %c14_i32 : i32 to vector<16x16xi32>
    %15 = arith.cmpi slt, %0, %14 : vector<16x16xi32>
    %16 = arith.andi %13, %15 : vector<16x16xi1>
    %cst_3 = arith.constant 1.000000e+00 : f32
    %cst_4 = arith.constant 0.000000e+00 : f32
    %17 = vector.broadcast %cst_3 : f32 to vector<16x16xf32>
    %18 = vector.broadcast %cst_4 : f32 to vector<16x16xf32>
    %19 = arith.select %16, %17, %18 : vector<16x16xi1>, vector<16x16xf32>
    %c0 = arith.constant 0 : index
    %c0_5 = arith.constant 0 : index
    %20 = vector.load %arg0[%c0, %c0_5] : memref<16x4xf32, #tpu.memory_space<vmem>>, vector<16x4xf32>
    %c0_6 = arith.constant 0 : index
    %c0_7 = arith.constant 0 : index
    %c0_8 = arith.constant 0 : index
    %21 = vector.load %arg1[%c0_6, %c0_7, %c0_8] : memref<3x4x16xf32, #tpu.memory_space<vmem>>, vector<1x4x16xf32>
    %22 = vector.shape_cast %21 : vector<1x4x16xf32> to vector<4x16xf32>
    %cst_9 = arith.constant dense<0.000000e+00> : vector<16x16xf32>
    %23 = tpu.matmul %20, %22, %cst_9 {dimension_numbers = #tpu.dot_dimension_numbers<[1], [0], [0], [1], [0, 0, 1, 1], [], []>} : vector<16x4xf32>, vector<4x16xf32>, vector<16x16xf32> -> vector<16x16xf32>
    %c1 = arith.constant 1 : index
    %c0_10 = arith.constant 0 : index
    %c0_11 = arith.constant 0 : index
    %24 = vector.load %arg1[%c1, %c0_10, %c0_11] : memref<3x4x16xf32, #tpu.memory_space<vmem>>, vector<1x4x16xf32>
    %25 = vector.shape_cast %24 : vector<1x4x16xf32> to vector<4x16xf32>
    %cst_12 = arith.constant dense<0.000000e+00> : vector<16x16xf32>
    %26 = tpu.matmul %20, %25, %cst_12 {dimension_numbers = #tpu.dot_dimension_numbers<[1], [0], [0], [1], [0, 0, 1, 1], [], []>} : vector<16x4xf32>, vector<4x16xf32>, vector<16x16xf32> -> vector<16x16xf32>
    %c2 = arith.constant 2 : index
    %c0_13 = arith.constant 0 : index
    %c0_14 = arith.constant 0 : index
    %27 = vector.load %arg1[%c2, %c0_13, %c0_14] : memref<3x4x16xf32, #tpu.memory_space<vmem>>, vector<1x4x16xf32>
    %28 = vector.shape_cast %27 : vector<1x4x16xf32> to vector<4x16xf32>
    %cst_15 = arith.constant dense<0.000000e+00> : vector<16x16xf32>
    %29 = tpu.matmul %20, %28, %cst_15 {dimension_numbers = #tpu.dot_dimension_numbers<[1], [0], [0], [1], [0, 0, 1, 1], [], []>} : vector<16x4xf32>, vector<4x16xf32>, vector<16x16xf32> -> vector<16x16xf32>
    %cst_16 = arith.constant dense<0.000000e+00> : vector<16x16xf32>
    %30 = tpu.matmul %10, %23, %cst_16 {dimension_numbers = #tpu.dot_dimension_numbers<[1], [0], [0], [1], [0, 0, 1, 1], [], []>} : vector<16x16xf32>, vector<16x16xf32>, vector<16x16xf32> -> vector<16x16xf32>
    %31 = arith.addf %30, %26 : vector<16x16xf32>
    %cst_17 = arith.constant dense<0.000000e+00> : vector<16x16xf32>
    %32 = tpu.matmul %19, %29, %cst_17 {dimension_numbers = #tpu.dot_dimension_numbers<[1], [0], [0], [1], [0, 0, 1, 1], [], []>} : vector<16x16xf32>, vector<16x16xf32>, vector<16x16xf32> -> vector<16x16xf32>
    %33 = arith.addf %31, %32 : vector<16x16xf32>
    %c0_18 = arith.constant 0 : index
    %c0_19 = arith.constant 0 : index
    %34 = vector.load %arg2[%c0_18, %c0_19] : memref<1x16xf32, #tpu.memory_space<vmem>>, vector<1x16xf32>
    %35 = vector.broadcast %34 : vector<1x16xf32> to vector<16x16xf32>
    %36 = arith.addf %33, %35 : vector<16x16xf32>
    %cst_20 = arith.constant 0.000000e+00 : f32
    %37 = vector.broadcast %cst_20 : f32 to vector<16x16xf32>
    %38 = arith.maximumf %36, %37 : vector<16x16xf32>
    %c0_21 = arith.constant 0 : index
    %c0_22 = arith.constant 0 : index
    %c0_23 = arith.constant 0 : index
    %39 = vector.load %arg3[%c0_21, %c0_22, %c0_23] : memref<3x16x32xf32, #tpu.memory_space<vmem>>, vector<1x16x32xf32>
    %40 = vector.shape_cast %39 : vector<1x16x32xf32> to vector<16x32xf32>
    %cst_24 = arith.constant dense<0.000000e+00> : vector<16x32xf32>
    %41 = tpu.matmul %38, %40, %cst_24 {dimension_numbers = #tpu.dot_dimension_numbers<[1], [0], [0], [1], [0, 0, 1, 1], [], []>} : vector<16x16xf32>, vector<16x32xf32>, vector<16x32xf32> -> vector<16x32xf32>
    %c1_25 = arith.constant 1 : index
    %c0_26 = arith.constant 0 : index
    %c0_27 = arith.constant 0 : index
    %42 = vector.load %arg3[%c1_25, %c0_26, %c0_27] : memref<3x16x32xf32, #tpu.memory_space<vmem>>, vector<1x16x32xf32>
    %43 = vector.shape_cast %42 : vector<1x16x32xf32> to vector<16x32xf32>
    %cst_28 = arith.constant dense<0.000000e+00> : vector<16x32xf32>
    %44 = tpu.matmul %38, %43, %cst_28 {dimension_numbers = #tpu.dot_dimension_numbers<[1], [0], [0], [1], [0, 0, 1, 1], [], []>} : vector<16x16xf32>, vector<16x32xf32>, vector<16x32xf32> -> vector<16x32xf32>
    %c2_29 = arith.constant 2 : index
    %c0_30 = arith.constant 0 : index
    %c0_31 = arith.constant 0 : index
    %45 = vector.load %arg3[%c2_29, %c0_30, %c0_31] : memref<3x16x32xf32, #tpu.memory_space<vmem>>, vector<1x16x32xf32>
    %46 = vector.shape_cast %45 : vector<1x16x32xf32> to vector<16x32xf32>
    %cst_32 = arith.constant dense<0.000000e+00> : vector<16x32xf32>
    %47 = tpu.matmul %38, %46, %cst_32 {dimension_numbers = #tpu.dot_dimension_numbers<[1], [0], [0], [1], [0, 0, 1, 1], [], []>} : vector<16x16xf32>, vector<16x32xf32>, vector<16x32xf32> -> vector<16x32xf32>
    %cst_33 = arith.constant dense<0.000000e+00> : vector<16x32xf32>
    %48 = tpu.matmul %10, %41, %cst_33 {dimension_numbers = #tpu.dot_dimension_numbers<[1], [0], [0], [1], [0, 0, 1, 1], [], []>} : vector<16x16xf32>, vector<16x32xf32>, vector<16x32xf32> -> vector<16x32xf32>
    %49 = arith.addf %48, %44 : vector<16x32xf32>
    %cst_34 = arith.constant dense<0.000000e+00> : vector<16x32xf32>
    %50 = tpu.matmul %19, %47, %cst_34 {dimension_numbers = #tpu.dot_dimension_numbers<[1], [0], [0], [1], [0, 0, 1, 1], [], []>} : vector<16x16xf32>, vector<16x32xf32>, vector<16x32xf32> -> vector<16x32xf32>
    %51 = arith.addf %49, %50 : vector<16x32xf32>
    %c0_35 = arith.constant 0 : index
    %c0_36 = arith.constant 0 : index
    %52 = vector.load %arg4[%c0_35, %c0_36] : memref<1x32xf32, #tpu.memory_space<vmem>>, vector<1x32xf32>
    %53 = vector.broadcast %52 : vector<1x32xf32> to vector<16x32xf32>
    %54 = arith.addf %51, %53 : vector<16x32xf32>
    %cst_37 = arith.constant 0.000000e+00 : f32
    %55 = vector.broadcast %cst_37 : f32 to vector<16x32xf32>
    %56 = arith.maximumf %54, %55 : vector<16x32xf32>
    %c0_38 = arith.constant 0 : index
    %c0_39 = arith.constant 0 : index
    %57 = vector.load %arg5[%c0_38, %c0_39] : memref<32x128xf32, #tpu.memory_space<vmem>>, vector<32x128xf32>
    %cst_40 = arith.constant dense<0.000000e+00> : vector<16x128xf32>
    %58 = tpu.matmul %56, %57, %cst_40 {dimension_numbers = #tpu.dot_dimension_numbers<[1], [0], [0], [1], [0, 0, 1, 1], [], []>} : vector<16x32xf32>, vector<32x128xf32>, vector<16x128xf32> -> vector<16x128xf32>
    %c0_41 = arith.constant 0 : index
    %c0_42 = arith.constant 0 : index
    %59 = vector.load %arg7[%c0_41, %c0_42] : memref<1x128xf32, #tpu.memory_space<vmem>>, vector<1x128xf32>
    %60 = vector.broadcast %59 : vector<1x128xf32> to vector<16x128xf32>
    %61 = arith.addf %58, %60 : vector<16x128xf32>
    %cst_43 = arith.constant 0.000000e+00 : f32
    %62 = vector.broadcast %cst_43 : f32 to vector<2x32xf32>
    %cst_44 = arith.constant 0.000000e+00 : f32
    %63 = vector.broadcast %cst_44 : f32 to vector<2x32xf32>
    %cst_45 = arith.constant 0.000000e+00 : f32
    %64 = vector.broadcast %cst_45 : f32 to vector<2x32xf32>
    %cst_46 = arith.constant 0.000000e+00 : f32
    %65 = vector.broadcast %cst_46 : f32 to vector<2x32xf32>
    %c0_47 = arith.constant 0 : index
    %c0_48 = arith.constant 0 : index
    %66 = vector.load %arg6[%c0_47, %c0_48] : memref<32x128xf32, #tpu.memory_space<vmem>>, vector<32x128xf32>
    %67 = vector.extract_strided_slice %61 {offsets = [0, 0], sizes = [2, 128], strides = [1, 1]} : vector<16x128xf32> to vector<2x128xf32>
    %cst_49 = arith.constant dense<0.000000e+00> : vector<2x128xf32>
    %68 = tpu.matmul %62, %66, %cst_49 {dimension_numbers = #tpu.dot_dimension_numbers<[1], [0], [0], [1], [0, 0, 1, 1], [], []>} : vector<2x32xf32>, vector<32x128xf32>, vector<2x128xf32> -> vector<2x128xf32>
    %69 = arith.addf %67, %68 : vector<2x128xf32>
    %70 = vector.extract_strided_slice %69 {offsets = [0, 0], sizes = [2, 32], strides = [1, 1]} : vector<2x128xf32> to vector<2x32xf32>
    %71 = arith.negf %70 : vector<2x32xf32>
    %72 = math.exp %71 : vector<2x32xf32>
    %cst_50 = arith.constant 1.000000e+00 : f32
    %73 = vector.broadcast %cst_50 : f32 to vector<2x32xf32>
    %74 = arith.addf %73, %72 : vector<2x32xf32>
    %75 = arith.divf %73, %74 : vector<2x32xf32>
    %76 = vector.extract_strided_slice %69 {offsets = [0, 32], sizes = [2, 32], strides = [1, 1]} : vector<2x128xf32> to vector<2x32xf32>
    %77 = arith.negf %76 : vector<2x32xf32>
    %78 = math.exp %77 : vector<2x32xf32>
    %cst_51 = arith.constant 1.000000e+00 : f32
    %79 = vector.broadcast %cst_51 : f32 to vector<2x32xf32>
    %80 = arith.addf %79, %78 : vector<2x32xf32>
    %81 = arith.divf %79, %80 : vector<2x32xf32>
    %82 = vector.extract_strided_slice %69 {offsets = [0, 64], sizes = [2, 32], strides = [1, 1]} : vector<2x128xf32> to vector<2x32xf32>
    %83 = math.tanh %82 : vector<2x32xf32>
    %84 = vector.extract_strided_slice %69 {offsets = [0, 96], sizes = [2, 32], strides = [1, 1]} : vector<2x128xf32> to vector<2x32xf32>
    %85 = arith.negf %84 : vector<2x32xf32>
    %86 = math.exp %85 : vector<2x32xf32>
    %cst_52 = arith.constant 1.000000e+00 : f32
    %87 = vector.broadcast %cst_52 : f32 to vector<2x32xf32>
    %88 = arith.addf %87, %86 : vector<2x32xf32>
    %89 = arith.divf %87, %88 : vector<2x32xf32>
    %90 = arith.mulf %81, %64 : vector<2x32xf32>
    %91 = arith.mulf %75, %83 : vector<2x32xf32>
    %92 = arith.addf %90, %91 : vector<2x32xf32>
    %93 = math.tanh %92 : vector<2x32xf32>
    %94 = arith.mulf %89, %93 : vector<2x32xf32>
    %c0_53 = arith.constant 0 : index
    %c0_54 = arith.constant 0 : index
    %95 = vector.load %arg9[%c0_53, %c0_54] : memref<32x128xf32, #tpu.memory_space<vmem>>, vector<32x128xf32>
    %c0_55 = arith.constant 0 : index
    %c0_56 = arith.constant 0 : index
    %96 = vector.load %arg8[%c0_55, %c0_56] : memref<32x128xf32, #tpu.memory_space<vmem>>, vector<32x128xf32>
    %c0_57 = arith.constant 0 : index
    %c0_58 = arith.constant 0 : index
    %97 = vector.load %arg10[%c0_57, %c0_58] : memref<1x128xf32, #tpu.memory_space<vmem>>, vector<1x128xf32>
    %cst_59 = arith.constant dense<0.000000e+00> : vector<2x128xf32>
    %98 = tpu.matmul %94, %96, %cst_59 {dimension_numbers = #tpu.dot_dimension_numbers<[1], [0], [0], [1], [0, 0, 1, 1], [], []>} : vector<2x32xf32>, vector<32x128xf32>, vector<2x128xf32> -> vector<2x128xf32>
    %cst_60 = arith.constant dense<0.000000e+00> : vector<2x128xf32>
    %99 = tpu.matmul %63, %95, %cst_60 {dimension_numbers = #tpu.dot_dimension_numbers<[1], [0], [0], [1], [0, 0, 1, 1], [], []>} : vector<2x32xf32>, vector<32x128xf32>, vector<2x128xf32> -> vector<2x128xf32>
    %100 = arith.addf %98, %99 : vector<2x128xf32>
    %101 = vector.broadcast %97 : vector<1x128xf32> to vector<2x128xf32>
    %102 = arith.addf %100, %101 : vector<2x128xf32>
    %103 = vector.extract_strided_slice %102 {offsets = [0, 0], sizes = [2, 32], strides = [1, 1]} : vector<2x128xf32> to vector<2x32xf32>
    %104 = arith.negf %103 : vector<2x32xf32>
    %105 = math.exp %104 : vector<2x32xf32>
    %cst_61 = arith.constant 1.000000e+00 : f32
    %106 = vector.broadcast %cst_61 : f32 to vector<2x32xf32>
    %107 = arith.addf %106, %105 : vector<2x32xf32>
    %108 = arith.divf %106, %107 : vector<2x32xf32>
    %109 = vector.extract_strided_slice %102 {offsets = [0, 32], sizes = [2, 32], strides = [1, 1]} : vector<2x128xf32> to vector<2x32xf32>
    %110 = arith.negf %109 : vector<2x32xf32>
    %111 = math.exp %110 : vector<2x32xf32>
    %cst_62 = arith.constant 1.000000e+00 : f32
    %112 = vector.broadcast %cst_62 : f32 to vector<2x32xf32>
    %113 = arith.addf %112, %111 : vector<2x32xf32>
    %114 = arith.divf %112, %113 : vector<2x32xf32>
    %115 = vector.extract_strided_slice %102 {offsets = [0, 64], sizes = [2, 32], strides = [1, 1]} : vector<2x128xf32> to vector<2x32xf32>
    %116 = math.tanh %115 : vector<2x32xf32>
    %117 = vector.extract_strided_slice %102 {offsets = [0, 96], sizes = [2, 32], strides = [1, 1]} : vector<2x128xf32> to vector<2x32xf32>
    %118 = arith.negf %117 : vector<2x32xf32>
    %119 = math.exp %118 : vector<2x32xf32>
    %cst_63 = arith.constant 1.000000e+00 : f32
    %120 = vector.broadcast %cst_63 : f32 to vector<2x32xf32>
    %121 = arith.addf %120, %119 : vector<2x32xf32>
    %122 = arith.divf %120, %121 : vector<2x32xf32>
    %123 = arith.mulf %114, %65 : vector<2x32xf32>
    %124 = arith.mulf %108, %116 : vector<2x32xf32>
    %125 = arith.addf %123, %124 : vector<2x32xf32>
    %126 = math.tanh %125 : vector<2x32xf32>
    %127 = arith.mulf %122, %126 : vector<2x32xf32>
    %c0_64 = arith.constant 0 : index
    %c0_65 = arith.constant 0 : index
    %128 = vector.load %arg6[%c0_64, %c0_65] : memref<32x128xf32, #tpu.memory_space<vmem>>, vector<32x128xf32>
    %129 = vector.extract_strided_slice %61 {offsets = [2, 0], sizes = [2, 128], strides = [1, 1]} : vector<16x128xf32> to vector<2x128xf32>
    %cst_66 = arith.constant dense<0.000000e+00> : vector<2x128xf32>
    %130 = tpu.matmul %94, %128, %cst_66 {dimension_numbers = #tpu.dot_dimension_numbers<[1], [0], [0], [1], [0, 0, 1, 1], [], []>} : vector<2x32xf32>, vector<32x128xf32>, vector<2x128xf32> -> vector<2x128xf32>
    %131 = arith.addf %129, %130 : vector<2x128xf32>
    %132 = vector.extract_strided_slice %131 {offsets = [0, 0], sizes = [2, 32], strides = [1, 1]} : vector<2x128xf32> to vector<2x32xf32>
    %133 = arith.negf %132 : vector<2x32xf32>
    %134 = math.exp %133 : vector<2x32xf32>
    %cst_67 = arith.constant 1.000000e+00 : f32
    %135 = vector.broadcast %cst_67 : f32 to vector<2x32xf32>
    %136 = arith.addf %135, %134 : vector<2x32xf32>
    %137 = arith.divf %135, %136 : vector<2x32xf32>
    %138 = vector.extract_strided_slice %131 {offsets = [0, 32], sizes = [2, 32], strides = [1, 1]} : vector<2x128xf32> to vector<2x32xf32>
    %139 = arith.negf %138 : vector<2x32xf32>
    %140 = math.exp %139 : vector<2x32xf32>
    %cst_68 = arith.constant 1.000000e+00 : f32
    %141 = vector.broadcast %cst_68 : f32 to vector<2x32xf32>
    %142 = arith.addf %141, %140 : vector<2x32xf32>
    %143 = arith.divf %141, %142 : vector<2x32xf32>
    %144 = vector.extract_strided_slice %131 {offsets = [0, 64], sizes = [2, 32], strides = [1, 1]} : vector<2x128xf32> to vector<2x32xf32>
    %145 = math.tanh %144 : vector<2x32xf32>
    %146 = vector.extract_strided_slice %131 {offsets = [0, 96], sizes = [2, 32], strides = [1, 1]} : vector<2x128xf32> to vector<2x32xf32>
    %147 = arith.negf %146 : vector<2x32xf32>
    %148 = math.exp %147 : vector<2x32xf32>
    %cst_69 = arith.constant 1.000000e+00 : f32
    %149 = vector.broadcast %cst_69 : f32 to vector<2x32xf32>
    %150 = arith.addf %149, %148 : vector<2x32xf32>
    %151 = arith.divf %149, %150 : vector<2x32xf32>
    %152 = arith.mulf %143, %92 : vector<2x32xf32>
    %153 = arith.mulf %137, %145 : vector<2x32xf32>
    %154 = arith.addf %152, %153 : vector<2x32xf32>
    %155 = math.tanh %154 : vector<2x32xf32>
    %156 = arith.mulf %151, %155 : vector<2x32xf32>
    %c0_70 = arith.constant 0 : index
    %c0_71 = arith.constant 0 : index
    %157 = vector.load %arg9[%c0_70, %c0_71] : memref<32x128xf32, #tpu.memory_space<vmem>>, vector<32x128xf32>
    %c0_72 = arith.constant 0 : index
    %c0_73 = arith.constant 0 : index
    %158 = vector.load %arg8[%c0_72, %c0_73] : memref<32x128xf32, #tpu.memory_space<vmem>>, vector<32x128xf32>
    %c0_74 = arith.constant 0 : index
    %c0_75 = arith.constant 0 : index
    %159 = vector.load %arg10[%c0_74, %c0_75] : memref<1x128xf32, #tpu.memory_space<vmem>>, vector<1x128xf32>
    %cst_76 = arith.constant dense<0.000000e+00> : vector<2x128xf32>
    %160 = tpu.matmul %156, %158, %cst_76 {dimension_numbers = #tpu.dot_dimension_numbers<[1], [0], [0], [1], [0, 0, 1, 1], [], []>} : vector<2x32xf32>, vector<32x128xf32>, vector<2x128xf32> -> vector<2x128xf32>
    %cst_77 = arith.constant dense<0.000000e+00> : vector<2x128xf32>
    %161 = tpu.matmul %127, %157, %cst_77 {dimension_numbers = #tpu.dot_dimension_numbers<[1], [0], [0], [1], [0, 0, 1, 1], [], []>} : vector<2x32xf32>, vector<32x128xf32>, vector<2x128xf32> -> vector<2x128xf32>
    %162 = arith.addf %160, %161 : vector<2x128xf32>
    %163 = vector.broadcast %159 : vector<1x128xf32> to vector<2x128xf32>
    %164 = arith.addf %162, %163 : vector<2x128xf32>
    %165 = vector.extract_strided_slice %164 {offsets = [0, 0], sizes = [2, 32], strides = [1, 1]} : vector<2x128xf32> to vector<2x32xf32>
    %166 = arith.negf %165 : vector<2x32xf32>
    %167 = math.exp %166 : vector<2x32xf32>
    %cst_78 = arith.constant 1.000000e+00 : f32
    %168 = vector.broadcast %cst_78 : f32 to vector<2x32xf32>
    %169 = arith.addf %168, %167 : vector<2x32xf32>
    %170 = arith.divf %168, %169 : vector<2x32xf32>
    %171 = vector.extract_strided_slice %164 {offsets = [0, 32], sizes = [2, 32], strides = [1, 1]} : vector<2x128xf32> to vector<2x32xf32>
    %172 = arith.negf %171 : vector<2x32xf32>
    %173 = math.exp %172 : vector<2x32xf32>
    %cst_79 = arith.constant 1.000000e+00 : f32
    %174 = vector.broadcast %cst_79 : f32 to vector<2x32xf32>
    %175 = arith.addf %174, %173 : vector<2x32xf32>
    %176 = arith.divf %174, %175 : vector<2x32xf32>
    %177 = vector.extract_strided_slice %164 {offsets = [0, 64], sizes = [2, 32], strides = [1, 1]} : vector<2x128xf32> to vector<2x32xf32>
    %178 = math.tanh %177 : vector<2x32xf32>
    %179 = vector.extract_strided_slice %164 {offsets = [0, 96], sizes = [2, 32], strides = [1, 1]} : vector<2x128xf32> to vector<2x32xf32>
    %180 = arith.negf %179 : vector<2x32xf32>
    %181 = math.exp %180 : vector<2x32xf32>
    %cst_80 = arith.constant 1.000000e+00 : f32
    %182 = vector.broadcast %cst_80 : f32 to vector<2x32xf32>
    %183 = arith.addf %182, %181 : vector<2x32xf32>
    %184 = arith.divf %182, %183 : vector<2x32xf32>
    %185 = arith.mulf %176, %125 : vector<2x32xf32>
    %186 = arith.mulf %170, %178 : vector<2x32xf32>
    %187 = arith.addf %185, %186 : vector<2x32xf32>
    %188 = math.tanh %187 : vector<2x32xf32>
    %189 = arith.mulf %184, %188 : vector<2x32xf32>
    %c0_81 = arith.constant 0 : index
    %c0_82 = arith.constant 0 : index
    %190 = vector.load %arg6[%c0_81, %c0_82] : memref<32x128xf32, #tpu.memory_space<vmem>>, vector<32x128xf32>
    %191 = vector.extract_strided_slice %61 {offsets = [4, 0], sizes = [2, 128], strides = [1, 1]} : vector<16x128xf32> to vector<2x128xf32>
    %cst_83 = arith.constant dense<0.000000e+00> : vector<2x128xf32>
    %192 = tpu.matmul %156, %190, %cst_83 {dimension_numbers = #tpu.dot_dimension_numbers<[1], [0], [0], [1], [0, 0, 1, 1], [], []>} : vector<2x32xf32>, vector<32x128xf32>, vector<2x128xf32> -> vector<2x128xf32>
    %193 = arith.addf %191, %192 : vector<2x128xf32>
    %194 = vector.extract_strided_slice %193 {offsets = [0, 0], sizes = [2, 32], strides = [1, 1]} : vector<2x128xf32> to vector<2x32xf32>
    %195 = arith.negf %194 : vector<2x32xf32>
    %196 = math.exp %195 : vector<2x32xf32>
    %cst_84 = arith.constant 1.000000e+00 : f32
    %197 = vector.broadcast %cst_84 : f32 to vector<2x32xf32>
    %198 = arith.addf %197, %196 : vector<2x32xf32>
    %199 = arith.divf %197, %198 : vector<2x32xf32>
    %200 = vector.extract_strided_slice %193 {offsets = [0, 32], sizes = [2, 32], strides = [1, 1]} : vector<2x128xf32> to vector<2x32xf32>
    %201 = arith.negf %200 : vector<2x32xf32>
    %202 = math.exp %201 : vector<2x32xf32>
    %cst_85 = arith.constant 1.000000e+00 : f32
    %203 = vector.broadcast %cst_85 : f32 to vector<2x32xf32>
    %204 = arith.addf %203, %202 : vector<2x32xf32>
    %205 = arith.divf %203, %204 : vector<2x32xf32>
    %206 = vector.extract_strided_slice %193 {offsets = [0, 64], sizes = [2, 32], strides = [1, 1]} : vector<2x128xf32> to vector<2x32xf32>
    %207 = math.tanh %206 : vector<2x32xf32>
    %208 = vector.extract_strided_slice %193 {offsets = [0, 96], sizes = [2, 32], strides = [1, 1]} : vector<2x128xf32> to vector<2x32xf32>
    %209 = arith.negf %208 : vector<2x32xf32>
    %210 = math.exp %209 : vector<2x32xf32>
    %cst_86 = arith.constant 1.000000e+00 : f32
    %211 = vector.broadcast %cst_86 : f32 to vector<2x32xf32>
    %212 = arith.addf %211, %210 : vector<2x32xf32>
    %213 = arith.divf %211, %212 : vector<2x32xf32>
    %214 = arith.mulf %205, %154 : vector<2x32xf32>
    %215 = arith.mulf %199, %207 : vector<2x32xf32>
    %216 = arith.addf %214, %215 : vector<2x32xf32>
    %217 = math.tanh %216 : vector<2x32xf32>
    %218 = arith.mulf %213, %217 : vector<2x32xf32>
    %c0_87 = arith.constant 0 : index
    %c0_88 = arith.constant 0 : index
    %219 = vector.load %arg9[%c0_87, %c0_88] : memref<32x128xf32, #tpu.memory_space<vmem>>, vector<32x128xf32>
    %c0_89 = arith.constant 0 : index
    %c0_90 = arith.constant 0 : index
    %220 = vector.load %arg8[%c0_89, %c0_90] : memref<32x128xf32, #tpu.memory_space<vmem>>, vector<32x128xf32>
    %c0_91 = arith.constant 0 : index
    %c0_92 = arith.constant 0 : index
    %221 = vector.load %arg10[%c0_91, %c0_92] : memref<1x128xf32, #tpu.memory_space<vmem>>, vector<1x128xf32>
    %cst_93 = arith.constant dense<0.000000e+00> : vector<2x128xf32>
    %222 = tpu.matmul %218, %220, %cst_93 {dimension_numbers = #tpu.dot_dimension_numbers<[1], [0], [0], [1], [0, 0, 1, 1], [], []>} : vector<2x32xf32>, vector<32x128xf32>, vector<2x128xf32> -> vector<2x128xf32>
    %cst_94 = arith.constant dense<0.000000e+00> : vector<2x128xf32>
    %223 = tpu.matmul %189, %219, %cst_94 {dimension_numbers = #tpu.dot_dimension_numbers<[1], [0], [0], [1], [0, 0, 1, 1], [], []>} : vector<2x32xf32>, vector<32x128xf32>, vector<2x128xf32> -> vector<2x128xf32>
    %224 = arith.addf %222, %223 : vector<2x128xf32>
    %225 = vector.broadcast %221 : vector<1x128xf32> to vector<2x128xf32>
    %226 = arith.addf %224, %225 : vector<2x128xf32>
    %227 = vector.extract_strided_slice %226 {offsets = [0, 0], sizes = [2, 32], strides = [1, 1]} : vector<2x128xf32> to vector<2x32xf32>
    %228 = arith.negf %227 : vector<2x32xf32>
    %229 = math.exp %228 : vector<2x32xf32>
    %cst_95 = arith.constant 1.000000e+00 : f32
    %230 = vector.broadcast %cst_95 : f32 to vector<2x32xf32>
    %231 = arith.addf %230, %229 : vector<2x32xf32>
    %232 = arith.divf %230, %231 : vector<2x32xf32>
    %233 = vector.extract_strided_slice %226 {offsets = [0, 32], sizes = [2, 32], strides = [1, 1]} : vector<2x128xf32> to vector<2x32xf32>
    %234 = arith.negf %233 : vector<2x32xf32>
    %235 = math.exp %234 : vector<2x32xf32>
    %cst_96 = arith.constant 1.000000e+00 : f32
    %236 = vector.broadcast %cst_96 : f32 to vector<2x32xf32>
    %237 = arith.addf %236, %235 : vector<2x32xf32>
    %238 = arith.divf %236, %237 : vector<2x32xf32>
    %239 = vector.extract_strided_slice %226 {offsets = [0, 64], sizes = [2, 32], strides = [1, 1]} : vector<2x128xf32> to vector<2x32xf32>
    %240 = math.tanh %239 : vector<2x32xf32>
    %241 = vector.extract_strided_slice %226 {offsets = [0, 96], sizes = [2, 32], strides = [1, 1]} : vector<2x128xf32> to vector<2x32xf32>
    %242 = arith.negf %241 : vector<2x32xf32>
    %243 = math.exp %242 : vector<2x32xf32>
    %cst_97 = arith.constant 1.000000e+00 : f32
    %244 = vector.broadcast %cst_97 : f32 to vector<2x32xf32>
    %245 = arith.addf %244, %243 : vector<2x32xf32>
    %246 = arith.divf %244, %245 : vector<2x32xf32>
    %247 = arith.mulf %238, %187 : vector<2x32xf32>
    %248 = arith.mulf %232, %240 : vector<2x32xf32>
    %249 = arith.addf %247, %248 : vector<2x32xf32>
    %250 = math.tanh %249 : vector<2x32xf32>
    %251 = arith.mulf %246, %250 : vector<2x32xf32>
    %c0_98 = arith.constant 0 : index
    %c0_99 = arith.constant 0 : index
    %252 = vector.load %arg6[%c0_98, %c0_99] : memref<32x128xf32, #tpu.memory_space<vmem>>, vector<32x128xf32>
    %253 = vector.extract_strided_slice %61 {offsets = [6, 0], sizes = [2, 128], strides = [1, 1]} : vector<16x128xf32> to vector<2x128xf32>
    %cst_100 = arith.constant dense<0.000000e+00> : vector<2x128xf32>
    %254 = tpu.matmul %218, %252, %cst_100 {dimension_numbers = #tpu.dot_dimension_numbers<[1], [0], [0], [1], [0, 0, 1, 1], [], []>} : vector<2x32xf32>, vector<32x128xf32>, vector<2x128xf32> -> vector<2x128xf32>
    %255 = arith.addf %253, %254 : vector<2x128xf32>
    %256 = vector.extract_strided_slice %255 {offsets = [0, 0], sizes = [2, 32], strides = [1, 1]} : vector<2x128xf32> to vector<2x32xf32>
    %257 = arith.negf %256 : vector<2x32xf32>
    %258 = math.exp %257 : vector<2x32xf32>
    %cst_101 = arith.constant 1.000000e+00 : f32
    %259 = vector.broadcast %cst_101 : f32 to vector<2x32xf32>
    %260 = arith.addf %259, %258 : vector<2x32xf32>
    %261 = arith.divf %259, %260 : vector<2x32xf32>
    %262 = vector.extract_strided_slice %255 {offsets = [0, 32], sizes = [2, 32], strides = [1, 1]} : vector<2x128xf32> to vector<2x32xf32>
    %263 = arith.negf %262 : vector<2x32xf32>
    %264 = math.exp %263 : vector<2x32xf32>
    %cst_102 = arith.constant 1.000000e+00 : f32
    %265 = vector.broadcast %cst_102 : f32 to vector<2x32xf32>
    %266 = arith.addf %265, %264 : vector<2x32xf32>
    %267 = arith.divf %265, %266 : vector<2x32xf32>
    %268 = vector.extract_strided_slice %255 {offsets = [0, 64], sizes = [2, 32], strides = [1, 1]} : vector<2x128xf32> to vector<2x32xf32>
    %269 = math.tanh %268 : vector<2x32xf32>
    %270 = vector.extract_strided_slice %255 {offsets = [0, 96], sizes = [2, 32], strides = [1, 1]} : vector<2x128xf32> to vector<2x32xf32>
    %271 = arith.negf %270 : vector<2x32xf32>
    %272 = math.exp %271 : vector<2x32xf32>
    %cst_103 = arith.constant 1.000000e+00 : f32
    %273 = vector.broadcast %cst_103 : f32 to vector<2x32xf32>
    %274 = arith.addf %273, %272 : vector<2x32xf32>
    %275 = arith.divf %273, %274 : vector<2x32xf32>
    %276 = arith.mulf %267, %216 : vector<2x32xf32>
    %277 = arith.mulf %261, %269 : vector<2x32xf32>
    %278 = arith.addf %276, %277 : vector<2x32xf32>
    %279 = math.tanh %278 : vector<2x32xf32>
    %280 = arith.mulf %275, %279 : vector<2x32xf32>
    %c0_104 = arith.constant 0 : index
    %c0_105 = arith.constant 0 : index
    %281 = vector.load %arg9[%c0_104, %c0_105] : memref<32x128xf32, #tpu.memory_space<vmem>>, vector<32x128xf32>
    %c0_106 = arith.constant 0 : index
    %c0_107 = arith.constant 0 : index
    %282 = vector.load %arg8[%c0_106, %c0_107] : memref<32x128xf32, #tpu.memory_space<vmem>>, vector<32x128xf32>
    %c0_108 = arith.constant 0 : index
    %c0_109 = arith.constant 0 : index
    %283 = vector.load %arg10[%c0_108, %c0_109] : memref<1x128xf32, #tpu.memory_space<vmem>>, vector<1x128xf32>
    %cst_110 = arith.constant dense<0.000000e+00> : vector<2x128xf32>
    %284 = tpu.matmul %280, %282, %cst_110 {dimension_numbers = #tpu.dot_dimension_numbers<[1], [0], [0], [1], [0, 0, 1, 1], [], []>} : vector<2x32xf32>, vector<32x128xf32>, vector<2x128xf32> -> vector<2x128xf32>
    %cst_111 = arith.constant dense<0.000000e+00> : vector<2x128xf32>
    %285 = tpu.matmul %251, %281, %cst_111 {dimension_numbers = #tpu.dot_dimension_numbers<[1], [0], [0], [1], [0, 0, 1, 1], [], []>} : vector<2x32xf32>, vector<32x128xf32>, vector<2x128xf32> -> vector<2x128xf32>
    %286 = arith.addf %284, %285 : vector<2x128xf32>
    %287 = vector.broadcast %283 : vector<1x128xf32> to vector<2x128xf32>
    %288 = arith.addf %286, %287 : vector<2x128xf32>
    %289 = vector.extract_strided_slice %288 {offsets = [0, 0], sizes = [2, 32], strides = [1, 1]} : vector<2x128xf32> to vector<2x32xf32>
    %290 = arith.negf %289 : vector<2x32xf32>
    %291 = math.exp %290 : vector<2x32xf32>
    %cst_112 = arith.constant 1.000000e+00 : f32
    %292 = vector.broadcast %cst_112 : f32 to vector<2x32xf32>
    %293 = arith.addf %292, %291 : vector<2x32xf32>
    %294 = arith.divf %292, %293 : vector<2x32xf32>
    %295 = vector.extract_strided_slice %288 {offsets = [0, 32], sizes = [2, 32], strides = [1, 1]} : vector<2x128xf32> to vector<2x32xf32>
    %296 = arith.negf %295 : vector<2x32xf32>
    %297 = math.exp %296 : vector<2x32xf32>
    %cst_113 = arith.constant 1.000000e+00 : f32
    %298 = vector.broadcast %cst_113 : f32 to vector<2x32xf32>
    %299 = arith.addf %298, %297 : vector<2x32xf32>
    %300 = arith.divf %298, %299 : vector<2x32xf32>
    %301 = vector.extract_strided_slice %288 {offsets = [0, 64], sizes = [2, 32], strides = [1, 1]} : vector<2x128xf32> to vector<2x32xf32>
    %302 = math.tanh %301 : vector<2x32xf32>
    %303 = vector.extract_strided_slice %288 {offsets = [0, 96], sizes = [2, 32], strides = [1, 1]} : vector<2x128xf32> to vector<2x32xf32>
    %304 = arith.negf %303 : vector<2x32xf32>
    %305 = math.exp %304 : vector<2x32xf32>
    %cst_114 = arith.constant 1.000000e+00 : f32
    %306 = vector.broadcast %cst_114 : f32 to vector<2x32xf32>
    %307 = arith.addf %306, %305 : vector<2x32xf32>
    %308 = arith.divf %306, %307 : vector<2x32xf32>
    %309 = arith.mulf %300, %249 : vector<2x32xf32>
    %310 = arith.mulf %294, %302 : vector<2x32xf32>
    %311 = arith.addf %309, %310 : vector<2x32xf32>
    %312 = math.tanh %311 : vector<2x32xf32>
    %313 = arith.mulf %308, %312 : vector<2x32xf32>
    %c0_115 = arith.constant 0 : index
    %c0_116 = arith.constant 0 : index
    %314 = vector.load %arg6[%c0_115, %c0_116] : memref<32x128xf32, #tpu.memory_space<vmem>>, vector<32x128xf32>
    %315 = vector.extract_strided_slice %61 {offsets = [8, 0], sizes = [2, 128], strides = [1, 1]} : vector<16x128xf32> to vector<2x128xf32>
    %cst_117 = arith.constant dense<0.000000e+00> : vector<2x128xf32>
    %316 = tpu.matmul %280, %314, %cst_117 {dimension_numbers = #tpu.dot_dimension_numbers<[1], [0], [0], [1], [0, 0, 1, 1], [], []>} : vector<2x32xf32>, vector<32x128xf32>, vector<2x128xf32> -> vector<2x128xf32>
    %317 = arith.addf %315, %316 : vector<2x128xf32>
    %318 = vector.extract_strided_slice %317 {offsets = [0, 0], sizes = [2, 32], strides = [1, 1]} : vector<2x128xf32> to vector<2x32xf32>
    %319 = arith.negf %318 : vector<2x32xf32>
    %320 = math.exp %319 : vector<2x32xf32>
    %cst_118 = arith.constant 1.000000e+00 : f32
    %321 = vector.broadcast %cst_118 : f32 to vector<2x32xf32>
    %322 = arith.addf %321, %320 : vector<2x32xf32>
    %323 = arith.divf %321, %322 : vector<2x32xf32>
    %324 = vector.extract_strided_slice %317 {offsets = [0, 32], sizes = [2, 32], strides = [1, 1]} : vector<2x128xf32> to vector<2x32xf32>
    %325 = arith.negf %324 : vector<2x32xf32>
    %326 = math.exp %325 : vector<2x32xf32>
    %cst_119 = arith.constant 1.000000e+00 : f32
    %327 = vector.broadcast %cst_119 : f32 to vector<2x32xf32>
    %328 = arith.addf %327, %326 : vector<2x32xf32>
    %329 = arith.divf %327, %328 : vector<2x32xf32>
    %330 = vector.extract_strided_slice %317 {offsets = [0, 64], sizes = [2, 32], strides = [1, 1]} : vector<2x128xf32> to vector<2x32xf32>
    %331 = math.tanh %330 : vector<2x32xf32>
    %332 = vector.extract_strided_slice %317 {offsets = [0, 96], sizes = [2, 32], strides = [1, 1]} : vector<2x128xf32> to vector<2x32xf32>
    %333 = arith.negf %332 : vector<2x32xf32>
    %334 = math.exp %333 : vector<2x32xf32>
    %cst_120 = arith.constant 1.000000e+00 : f32
    %335 = vector.broadcast %cst_120 : f32 to vector<2x32xf32>
    %336 = arith.addf %335, %334 : vector<2x32xf32>
    %337 = arith.divf %335, %336 : vector<2x32xf32>
    %338 = arith.mulf %329, %278 : vector<2x32xf32>
    %339 = arith.mulf %323, %331 : vector<2x32xf32>
    %340 = arith.addf %338, %339 : vector<2x32xf32>
    %341 = math.tanh %340 : vector<2x32xf32>
    %342 = arith.mulf %337, %341 : vector<2x32xf32>
    %c0_121 = arith.constant 0 : index
    %c0_122 = arith.constant 0 : index
    %343 = vector.load %arg9[%c0_121, %c0_122] : memref<32x128xf32, #tpu.memory_space<vmem>>, vector<32x128xf32>
    %c0_123 = arith.constant 0 : index
    %c0_124 = arith.constant 0 : index
    %344 = vector.load %arg8[%c0_123, %c0_124] : memref<32x128xf32, #tpu.memory_space<vmem>>, vector<32x128xf32>
    %c0_125 = arith.constant 0 : index
    %c0_126 = arith.constant 0 : index
    %345 = vector.load %arg10[%c0_125, %c0_126] : memref<1x128xf32, #tpu.memory_space<vmem>>, vector<1x128xf32>
    %cst_127 = arith.constant dense<0.000000e+00> : vector<2x128xf32>
    %346 = tpu.matmul %342, %344, %cst_127 {dimension_numbers = #tpu.dot_dimension_numbers<[1], [0], [0], [1], [0, 0, 1, 1], [], []>} : vector<2x32xf32>, vector<32x128xf32>, vector<2x128xf32> -> vector<2x128xf32>
    %cst_128 = arith.constant dense<0.000000e+00> : vector<2x128xf32>
    %347 = tpu.matmul %313, %343, %cst_128 {dimension_numbers = #tpu.dot_dimension_numbers<[1], [0], [0], [1], [0, 0, 1, 1], [], []>} : vector<2x32xf32>, vector<32x128xf32>, vector<2x128xf32> -> vector<2x128xf32>
    %348 = arith.addf %346, %347 : vector<2x128xf32>
    %349 = vector.broadcast %345 : vector<1x128xf32> to vector<2x128xf32>
    %350 = arith.addf %348, %349 : vector<2x128xf32>
    %351 = vector.extract_strided_slice %350 {offsets = [0, 0], sizes = [2, 32], strides = [1, 1]} : vector<2x128xf32> to vector<2x32xf32>
    %352 = arith.negf %351 : vector<2x32xf32>
    %353 = math.exp %352 : vector<2x32xf32>
    %cst_129 = arith.constant 1.000000e+00 : f32
    %354 = vector.broadcast %cst_129 : f32 to vector<2x32xf32>
    %355 = arith.addf %354, %353 : vector<2x32xf32>
    %356 = arith.divf %354, %355 : vector<2x32xf32>
    %357 = vector.extract_strided_slice %350 {offsets = [0, 32], sizes = [2, 32], strides = [1, 1]} : vector<2x128xf32> to vector<2x32xf32>
    %358 = arith.negf %357 : vector<2x32xf32>
    %359 = math.exp %358 : vector<2x32xf32>
    %cst_130 = arith.constant 1.000000e+00 : f32
    %360 = vector.broadcast %cst_130 : f32 to vector<2x32xf32>
    %361 = arith.addf %360, %359 : vector<2x32xf32>
    %362 = arith.divf %360, %361 : vector<2x32xf32>
    %363 = vector.extract_strided_slice %350 {offsets = [0, 64], sizes = [2, 32], strides = [1, 1]} : vector<2x128xf32> to vector<2x32xf32>
    %364 = math.tanh %363 : vector<2x32xf32>
    %365 = vector.extract_strided_slice %350 {offsets = [0, 96], sizes = [2, 32], strides = [1, 1]} : vector<2x128xf32> to vector<2x32xf32>
    %366 = arith.negf %365 : vector<2x32xf32>
    %367 = math.exp %366 : vector<2x32xf32>
    %cst_131 = arith.constant 1.000000e+00 : f32
    %368 = vector.broadcast %cst_131 : f32 to vector<2x32xf32>
    %369 = arith.addf %368, %367 : vector<2x32xf32>
    %370 = arith.divf %368, %369 : vector<2x32xf32>
    %371 = arith.mulf %362, %311 : vector<2x32xf32>
    %372 = arith.mulf %356, %364 : vector<2x32xf32>
    %373 = arith.addf %371, %372 : vector<2x32xf32>
    %374 = math.tanh %373 : vector<2x32xf32>
    %375 = arith.mulf %370, %374 : vector<2x32xf32>
    %c0_132 = arith.constant 0 : index
    %c0_133 = arith.constant 0 : index
    %376 = vector.load %arg6[%c0_132, %c0_133] : memref<32x128xf32, #tpu.memory_space<vmem>>, vector<32x128xf32>
    %377 = vector.extract_strided_slice %61 {offsets = [10, 0], sizes = [2, 128], strides = [1, 1]} : vector<16x128xf32> to vector<2x128xf32>
    %cst_134 = arith.constant dense<0.000000e+00> : vector<2x128xf32>
    %378 = tpu.matmul %342, %376, %cst_134 {dimension_numbers = #tpu.dot_dimension_numbers<[1], [0], [0], [1], [0, 0, 1, 1], [], []>} : vector<2x32xf32>, vector<32x128xf32>, vector<2x128xf32> -> vector<2x128xf32>
    %379 = arith.addf %377, %378 : vector<2x128xf32>
    %380 = vector.extract_strided_slice %379 {offsets = [0, 0], sizes = [2, 32], strides = [1, 1]} : vector<2x128xf32> to vector<2x32xf32>
    %381 = arith.negf %380 : vector<2x32xf32>
    %382 = math.exp %381 : vector<2x32xf32>
    %cst_135 = arith.constant 1.000000e+00 : f32
    %383 = vector.broadcast %cst_135 : f32 to vector<2x32xf32>
    %384 = arith.addf %383, %382 : vector<2x32xf32>
    %385 = arith.divf %383, %384 : vector<2x32xf32>
    %386 = vector.extract_strided_slice %379 {offsets = [0, 32], sizes = [2, 32], strides = [1, 1]} : vector<2x128xf32> to vector<2x32xf32>
    %387 = arith.negf %386 : vector<2x32xf32>
    %388 = math.exp %387 : vector<2x32xf32>
    %cst_136 = arith.constant 1.000000e+00 : f32
    %389 = vector.broadcast %cst_136 : f32 to vector<2x32xf32>
    %390 = arith.addf %389, %388 : vector<2x32xf32>
    %391 = arith.divf %389, %390 : vector<2x32xf32>
    %392 = vector.extract_strided_slice %379 {offsets = [0, 64], sizes = [2, 32], strides = [1, 1]} : vector<2x128xf32> to vector<2x32xf32>
    %393 = math.tanh %392 : vector<2x32xf32>
    %394 = vector.extract_strided_slice %379 {offsets = [0, 96], sizes = [2, 32], strides = [1, 1]} : vector<2x128xf32> to vector<2x32xf32>
    %395 = arith.negf %394 : vector<2x32xf32>
    %396 = math.exp %395 : vector<2x32xf32>
    %cst_137 = arith.constant 1.000000e+00 : f32
    %397 = vector.broadcast %cst_137 : f32 to vector<2x32xf32>
    %398 = arith.addf %397, %396 : vector<2x32xf32>
    %399 = arith.divf %397, %398 : vector<2x32xf32>
    %400 = arith.mulf %391, %340 : vector<2x32xf32>
    %401 = arith.mulf %385, %393 : vector<2x32xf32>
    %402 = arith.addf %400, %401 : vector<2x32xf32>
    %403 = math.tanh %402 : vector<2x32xf32>
    %404 = arith.mulf %399, %403 : vector<2x32xf32>
    %c0_138 = arith.constant 0 : index
    %c0_139 = arith.constant 0 : index
    %405 = vector.load %arg9[%c0_138, %c0_139] : memref<32x128xf32, #tpu.memory_space<vmem>>, vector<32x128xf32>
    %c0_140 = arith.constant 0 : index
    %c0_141 = arith.constant 0 : index
    %406 = vector.load %arg8[%c0_140, %c0_141] : memref<32x128xf32, #tpu.memory_space<vmem>>, vector<32x128xf32>
    %c0_142 = arith.constant 0 : index
    %c0_143 = arith.constant 0 : index
    %407 = vector.load %arg10[%c0_142, %c0_143] : memref<1x128xf32, #tpu.memory_space<vmem>>, vector<1x128xf32>
    %cst_144 = arith.constant dense<0.000000e+00> : vector<2x128xf32>
    %408 = tpu.matmul %404, %406, %cst_144 {dimension_numbers = #tpu.dot_dimension_numbers<[1], [0], [0], [1], [0, 0, 1, 1], [], []>} : vector<2x32xf32>, vector<32x128xf32>, vector<2x128xf32> -> vector<2x128xf32>
    %cst_145 = arith.constant dense<0.000000e+00> : vector<2x128xf32>
    %409 = tpu.matmul %375, %405, %cst_145 {dimension_numbers = #tpu.dot_dimension_numbers<[1], [0], [0], [1], [0, 0, 1, 1], [], []>} : vector<2x32xf32>, vector<32x128xf32>, vector<2x128xf32> -> vector<2x128xf32>
    %410 = arith.addf %408, %409 : vector<2x128xf32>
    %411 = vector.broadcast %407 : vector<1x128xf32> to vector<2x128xf32>
    %412 = arith.addf %410, %411 : vector<2x128xf32>
    %413 = vector.extract_strided_slice %412 {offsets = [0, 0], sizes = [2, 32], strides = [1, 1]} : vector<2x128xf32> to vector<2x32xf32>
    %414 = arith.negf %413 : vector<2x32xf32>
    %415 = math.exp %414 : vector<2x32xf32>
    %cst_146 = arith.constant 1.000000e+00 : f32
    %416 = vector.broadcast %cst_146 : f32 to vector<2x32xf32>
    %417 = arith.addf %416, %415 : vector<2x32xf32>
    %418 = arith.divf %416, %417 : vector<2x32xf32>
    %419 = vector.extract_strided_slice %412 {offsets = [0, 32], sizes = [2, 32], strides = [1, 1]} : vector<2x128xf32> to vector<2x32xf32>
    %420 = arith.negf %419 : vector<2x32xf32>
    %421 = math.exp %420 : vector<2x32xf32>
    %cst_147 = arith.constant 1.000000e+00 : f32
    %422 = vector.broadcast %cst_147 : f32 to vector<2x32xf32>
    %423 = arith.addf %422, %421 : vector<2x32xf32>
    %424 = arith.divf %422, %423 : vector<2x32xf32>
    %425 = vector.extract_strided_slice %412 {offsets = [0, 64], sizes = [2, 32], strides = [1, 1]} : vector<2x128xf32> to vector<2x32xf32>
    %426 = math.tanh %425 : vector<2x32xf32>
    %427 = vector.extract_strided_slice %412 {offsets = [0, 96], sizes = [2, 32], strides = [1, 1]} : vector<2x128xf32> to vector<2x32xf32>
    %428 = arith.negf %427 : vector<2x32xf32>
    %429 = math.exp %428 : vector<2x32xf32>
    %cst_148 = arith.constant 1.000000e+00 : f32
    %430 = vector.broadcast %cst_148 : f32 to vector<2x32xf32>
    %431 = arith.addf %430, %429 : vector<2x32xf32>
    %432 = arith.divf %430, %431 : vector<2x32xf32>
    %433 = arith.mulf %424, %373 : vector<2x32xf32>
    %434 = arith.mulf %418, %426 : vector<2x32xf32>
    %435 = arith.addf %433, %434 : vector<2x32xf32>
    %436 = math.tanh %435 : vector<2x32xf32>
    %437 = arith.mulf %432, %436 : vector<2x32xf32>
    %c0_149 = arith.constant 0 : index
    %c0_150 = arith.constant 0 : index
    %438 = vector.load %arg6[%c0_149, %c0_150] : memref<32x128xf32, #tpu.memory_space<vmem>>, vector<32x128xf32>
    %439 = vector.extract_strided_slice %61 {offsets = [12, 0], sizes = [2, 128], strides = [1, 1]} : vector<16x128xf32> to vector<2x128xf32>
    %cst_151 = arith.constant dense<0.000000e+00> : vector<2x128xf32>
    %440 = tpu.matmul %404, %438, %cst_151 {dimension_numbers = #tpu.dot_dimension_numbers<[1], [0], [0], [1], [0, 0, 1, 1], [], []>} : vector<2x32xf32>, vector<32x128xf32>, vector<2x128xf32> -> vector<2x128xf32>
    %441 = arith.addf %439, %440 : vector<2x128xf32>
    %442 = vector.extract_strided_slice %441 {offsets = [0, 0], sizes = [2, 32], strides = [1, 1]} : vector<2x128xf32> to vector<2x32xf32>
    %443 = arith.negf %442 : vector<2x32xf32>
    %444 = math.exp %443 : vector<2x32xf32>
    %cst_152 = arith.constant 1.000000e+00 : f32
    %445 = vector.broadcast %cst_152 : f32 to vector<2x32xf32>
    %446 = arith.addf %445, %444 : vector<2x32xf32>
    %447 = arith.divf %445, %446 : vector<2x32xf32>
    %448 = vector.extract_strided_slice %441 {offsets = [0, 32], sizes = [2, 32], strides = [1, 1]} : vector<2x128xf32> to vector<2x32xf32>
    %449 = arith.negf %448 : vector<2x32xf32>
    %450 = math.exp %449 : vector<2x32xf32>
    %cst_153 = arith.constant 1.000000e+00 : f32
    %451 = vector.broadcast %cst_153 : f32 to vector<2x32xf32>
    %452 = arith.addf %451, %450 : vector<2x32xf32>
    %453 = arith.divf %451, %452 : vector<2x32xf32>
    %454 = vector.extract_strided_slice %441 {offsets = [0, 64], sizes = [2, 32], strides = [1, 1]} : vector<2x128xf32> to vector<2x32xf32>
    %455 = math.tanh %454 : vector<2x32xf32>
    %456 = vector.extract_strided_slice %441 {offsets = [0, 96], sizes = [2, 32], strides = [1, 1]} : vector<2x128xf32> to vector<2x32xf32>
    %457 = arith.negf %456 : vector<2x32xf32>
    %458 = math.exp %457 : vector<2x32xf32>
    %cst_154 = arith.constant 1.000000e+00 : f32
    %459 = vector.broadcast %cst_154 : f32 to vector<2x32xf32>
    %460 = arith.addf %459, %458 : vector<2x32xf32>
    %461 = arith.divf %459, %460 : vector<2x32xf32>
    %462 = arith.mulf %453, %402 : vector<2x32xf32>
    %463 = arith.mulf %447, %455 : vector<2x32xf32>
    %464 = arith.addf %462, %463 : vector<2x32xf32>
    %465 = math.tanh %464 : vector<2x32xf32>
    %466 = arith.mulf %461, %465 : vector<2x32xf32>
    %c0_155 = arith.constant 0 : index
    %c0_156 = arith.constant 0 : index
    %467 = vector.load %arg9[%c0_155, %c0_156] : memref<32x128xf32, #tpu.memory_space<vmem>>, vector<32x128xf32>
    %c0_157 = arith.constant 0 : index
    %c0_158 = arith.constant 0 : index
    %468 = vector.load %arg8[%c0_157, %c0_158] : memref<32x128xf32, #tpu.memory_space<vmem>>, vector<32x128xf32>
    %c0_159 = arith.constant 0 : index
    %c0_160 = arith.constant 0 : index
    %469 = vector.load %arg10[%c0_159, %c0_160] : memref<1x128xf32, #tpu.memory_space<vmem>>, vector<1x128xf32>
    %cst_161 = arith.constant dense<0.000000e+00> : vector<2x128xf32>
    %470 = tpu.matmul %466, %468, %cst_161 {dimension_numbers = #tpu.dot_dimension_numbers<[1], [0], [0], [1], [0, 0, 1, 1], [], []>} : vector<2x32xf32>, vector<32x128xf32>, vector<2x128xf32> -> vector<2x128xf32>
    %cst_162 = arith.constant dense<0.000000e+00> : vector<2x128xf32>
    %471 = tpu.matmul %437, %467, %cst_162 {dimension_numbers = #tpu.dot_dimension_numbers<[1], [0], [0], [1], [0, 0, 1, 1], [], []>} : vector<2x32xf32>, vector<32x128xf32>, vector<2x128xf32> -> vector<2x128xf32>
    %472 = arith.addf %470, %471 : vector<2x128xf32>
    %473 = vector.broadcast %469 : vector<1x128xf32> to vector<2x128xf32>
    %474 = arith.addf %472, %473 : vector<2x128xf32>
    %475 = vector.extract_strided_slice %474 {offsets = [0, 0], sizes = [2, 32], strides = [1, 1]} : vector<2x128xf32> to vector<2x32xf32>
    %476 = arith.negf %475 : vector<2x32xf32>
    %477 = math.exp %476 : vector<2x32xf32>
    %cst_163 = arith.constant 1.000000e+00 : f32
    %478 = vector.broadcast %cst_163 : f32 to vector<2x32xf32>
    %479 = arith.addf %478, %477 : vector<2x32xf32>
    %480 = arith.divf %478, %479 : vector<2x32xf32>
    %481 = vector.extract_strided_slice %474 {offsets = [0, 32], sizes = [2, 32], strides = [1, 1]} : vector<2x128xf32> to vector<2x32xf32>
    %482 = arith.negf %481 : vector<2x32xf32>
    %483 = math.exp %482 : vector<2x32xf32>
    %cst_164 = arith.constant 1.000000e+00 : f32
    %484 = vector.broadcast %cst_164 : f32 to vector<2x32xf32>
    %485 = arith.addf %484, %483 : vector<2x32xf32>
    %486 = arith.divf %484, %485 : vector<2x32xf32>
    %487 = vector.extract_strided_slice %474 {offsets = [0, 64], sizes = [2, 32], strides = [1, 1]} : vector<2x128xf32> to vector<2x32xf32>
    %488 = math.tanh %487 : vector<2x32xf32>
    %489 = vector.extract_strided_slice %474 {offsets = [0, 96], sizes = [2, 32], strides = [1, 1]} : vector<2x128xf32> to vector<2x32xf32>
    %490 = arith.negf %489 : vector<2x32xf32>
    %491 = math.exp %490 : vector<2x32xf32>
    %cst_165 = arith.constant 1.000000e+00 : f32
    %492 = vector.broadcast %cst_165 : f32 to vector<2x32xf32>
    %493 = arith.addf %492, %491 : vector<2x32xf32>
    %494 = arith.divf %492, %493 : vector<2x32xf32>
    %495 = arith.mulf %486, %435 : vector<2x32xf32>
    %496 = arith.mulf %480, %488 : vector<2x32xf32>
    %497 = arith.addf %495, %496 : vector<2x32xf32>
    %498 = math.tanh %497 : vector<2x32xf32>
    %499 = arith.mulf %494, %498 : vector<2x32xf32>
    %c0_166 = arith.constant 0 : index
    %c0_167 = arith.constant 0 : index
    %500 = vector.load %arg6[%c0_166, %c0_167] : memref<32x128xf32, #tpu.memory_space<vmem>>, vector<32x128xf32>
    %501 = vector.extract_strided_slice %61 {offsets = [14, 0], sizes = [2, 128], strides = [1, 1]} : vector<16x128xf32> to vector<2x128xf32>
    %cst_168 = arith.constant dense<0.000000e+00> : vector<2x128xf32>
    %502 = tpu.matmul %466, %500, %cst_168 {dimension_numbers = #tpu.dot_dimension_numbers<[1], [0], [0], [1], [0, 0, 1, 1], [], []>} : vector<2x32xf32>, vector<32x128xf32>, vector<2x128xf32> -> vector<2x128xf32>
    %503 = arith.addf %501, %502 : vector<2x128xf32>
    %504 = vector.extract_strided_slice %503 {offsets = [0, 0], sizes = [2, 32], strides = [1, 1]} : vector<2x128xf32> to vector<2x32xf32>
    %505 = arith.negf %504 : vector<2x32xf32>
    %506 = math.exp %505 : vector<2x32xf32>
    %cst_169 = arith.constant 1.000000e+00 : f32
    %507 = vector.broadcast %cst_169 : f32 to vector<2x32xf32>
    %508 = arith.addf %507, %506 : vector<2x32xf32>
    %509 = arith.divf %507, %508 : vector<2x32xf32>
    %510 = vector.extract_strided_slice %503 {offsets = [0, 32], sizes = [2, 32], strides = [1, 1]} : vector<2x128xf32> to vector<2x32xf32>
    %511 = arith.negf %510 : vector<2x32xf32>
    %512 = math.exp %511 : vector<2x32xf32>
    %cst_170 = arith.constant 1.000000e+00 : f32
    %513 = vector.broadcast %cst_170 : f32 to vector<2x32xf32>
    %514 = arith.addf %513, %512 : vector<2x32xf32>
    %515 = arith.divf %513, %514 : vector<2x32xf32>
    %516 = vector.extract_strided_slice %503 {offsets = [0, 64], sizes = [2, 32], strides = [1, 1]} : vector<2x128xf32> to vector<2x32xf32>
    %517 = math.tanh %516 : vector<2x32xf32>
    %518 = vector.extract_strided_slice %503 {offsets = [0, 96], sizes = [2, 32], strides = [1, 1]} : vector<2x128xf32> to vector<2x32xf32>
    %519 = arith.negf %518 : vector<2x32xf32>
    %520 = math.exp %519 : vector<2x32xf32>
    %cst_171 = arith.constant 1.000000e+00 : f32
    %521 = vector.broadcast %cst_171 : f32 to vector<2x32xf32>
    %522 = arith.addf %521, %520 : vector<2x32xf32>
    %523 = arith.divf %521, %522 : vector<2x32xf32>
    %524 = arith.mulf %515, %464 : vector<2x32xf32>
    %525 = arith.mulf %509, %517 : vector<2x32xf32>
    %526 = arith.addf %524, %525 : vector<2x32xf32>
    %527 = math.tanh %526 : vector<2x32xf32>
    %528 = arith.mulf %523, %527 : vector<2x32xf32>
    %c0_172 = arith.constant 0 : index
    %c0_173 = arith.constant 0 : index
    %529 = vector.load %arg9[%c0_172, %c0_173] : memref<32x128xf32, #tpu.memory_space<vmem>>, vector<32x128xf32>
    %c0_174 = arith.constant 0 : index
    %c0_175 = arith.constant 0 : index
    %530 = vector.load %arg8[%c0_174, %c0_175] : memref<32x128xf32, #tpu.memory_space<vmem>>, vector<32x128xf32>
    %c0_176 = arith.constant 0 : index
    %c0_177 = arith.constant 0 : index
    %531 = vector.load %arg10[%c0_176, %c0_177] : memref<1x128xf32, #tpu.memory_space<vmem>>, vector<1x128xf32>
    %cst_178 = arith.constant dense<0.000000e+00> : vector<2x128xf32>
    %532 = tpu.matmul %528, %530, %cst_178 {dimension_numbers = #tpu.dot_dimension_numbers<[1], [0], [0], [1], [0, 0, 1, 1], [], []>} : vector<2x32xf32>, vector<32x128xf32>, vector<2x128xf32> -> vector<2x128xf32>
    %cst_179 = arith.constant dense<0.000000e+00> : vector<2x128xf32>
    %533 = tpu.matmul %499, %529, %cst_179 {dimension_numbers = #tpu.dot_dimension_numbers<[1], [0], [0], [1], [0, 0, 1, 1], [], []>} : vector<2x32xf32>, vector<32x128xf32>, vector<2x128xf32> -> vector<2x128xf32>
    %534 = arith.addf %532, %533 : vector<2x128xf32>
    %535 = vector.broadcast %531 : vector<1x128xf32> to vector<2x128xf32>
    %536 = arith.addf %534, %535 : vector<2x128xf32>
    %537 = vector.extract_strided_slice %536 {offsets = [0, 0], sizes = [2, 32], strides = [1, 1]} : vector<2x128xf32> to vector<2x32xf32>
    %538 = arith.negf %537 : vector<2x32xf32>
    %539 = math.exp %538 : vector<2x32xf32>
    %cst_180 = arith.constant 1.000000e+00 : f32
    %540 = vector.broadcast %cst_180 : f32 to vector<2x32xf32>
    %541 = arith.addf %540, %539 : vector<2x32xf32>
    %542 = arith.divf %540, %541 : vector<2x32xf32>
    %543 = vector.extract_strided_slice %536 {offsets = [0, 32], sizes = [2, 32], strides = [1, 1]} : vector<2x128xf32> to vector<2x32xf32>
    %544 = arith.negf %543 : vector<2x32xf32>
    %545 = math.exp %544 : vector<2x32xf32>
    %cst_181 = arith.constant 1.000000e+00 : f32
    %546 = vector.broadcast %cst_181 : f32 to vector<2x32xf32>
    %547 = arith.addf %546, %545 : vector<2x32xf32>
    %548 = arith.divf %546, %547 : vector<2x32xf32>
    %549 = vector.extract_strided_slice %536 {offsets = [0, 64], sizes = [2, 32], strides = [1, 1]} : vector<2x128xf32> to vector<2x32xf32>
    %550 = math.tanh %549 : vector<2x32xf32>
    %551 = vector.extract_strided_slice %536 {offsets = [0, 96], sizes = [2, 32], strides = [1, 1]} : vector<2x128xf32> to vector<2x32xf32>
    %552 = arith.negf %551 : vector<2x32xf32>
    %553 = math.exp %552 : vector<2x32xf32>
    %cst_182 = arith.constant 1.000000e+00 : f32
    %554 = vector.broadcast %cst_182 : f32 to vector<2x32xf32>
    %555 = arith.addf %554, %553 : vector<2x32xf32>
    %556 = arith.divf %554, %555 : vector<2x32xf32>
    %557 = arith.mulf %548, %497 : vector<2x32xf32>
    %558 = arith.mulf %542, %550 : vector<2x32xf32>
    %559 = arith.addf %557, %558 : vector<2x32xf32>
    %560 = math.tanh %559 : vector<2x32xf32>
    %561 = arith.mulf %556, %560 : vector<2x32xf32>
    %c0_183 = arith.constant 0 : index
    %c0_184 = arith.constant 0 : index
    %562 = vector.load %arg11[%c0_183, %c0_184] : memref<32x1xf32, #tpu.memory_space<vmem>>, vector<32x1xf32>
    %cst_185 = arith.constant dense<0.000000e+00> : vector<2x1xf32>
    %563 = tpu.matmul %561, %562, %cst_185 {dimension_numbers = #tpu.dot_dimension_numbers<[1], [0], [0], [1], [0, 0, 1, 1], [], []>} : vector<2x32xf32>, vector<32x1xf32>, vector<2x1xf32> -> vector<2x1xf32>
    %c0_186 = arith.constant 0 : index
    %c0_187 = arith.constant 0 : index
    %564 = vector.load %arg12[%c0_186, %c0_187] : memref<1x1xf32, #tpu.memory_space<vmem>>, vector<1x1xf32>
    %565 = vector.broadcast %564 : vector<1x1xf32> to vector<2x1xf32>
    %566 = arith.addf %563, %565 : vector<2x1xf32>
    %c0_188 = arith.constant 0 : index
    %c0_189 = arith.constant 0 : index
    %567 = vector.load %arg13[%c0_188, %c0_189] : memref<2x1xf32, #tpu.memory_space<vmem>>, vector<2x1xf32>
    tpu.vector_store %arg13[%c0_188, %c0_189], %566 {strides = array<i32>} : memref<2x1xf32, #tpu.memory_space<vmem>>, vector<2x1xf32>,
    return
  }
}

</mosaic_0001>

<llo_original>
// kernel: tpu_custom_call.1
$region0: #{tpu_custom_call.1}
  #allocation0 [shape = 'u32[]', space=smem, size = 0x4, offset = 0x4, fixed_abs, tag = 'smem constant byte address 0x4 - core index']
  #allocation1 [shape = 'u32[72,128]{1,0:T(1,128)}', space=vmem, size = 0x9000, scoped, tag = 'internal scratch']
  #allocation2 [shape = 'f32[1,1]{1,0:T(1,128)S(1)}', space=vmem, size = 0x200, scoped, tag = 'scoped memory for tpu_custom_call.1']
  %s0 = inlined_call_operand.vmem [shape: f32[16,4], index: 0, kind: input, shape index: {}]
  %s1 = inlined_call_operand.hbm [shape: f32[3,4,16], index: 1, kind: input, shape index: {}]
  %s2 = inlined_call_operand.vmem [shape: f32[1,16], index: 2, kind: input, shape index: {}]
  %s3 = inlined_call_operand.vmem [shape: f32[3,16,32], index: 3, kind: input, shape index: {}]
  %s4 = inlined_call_operand.vmem [shape: f32[1,32], index: 4, kind: input, shape index: {}]
  %s5 = inlined_call_operand.hbm [shape: f32[32,128], index: 5, kind: input, shape index: {}]
  %s6 = inlined_call_operand.hbm [shape: f32[32,128], index: 6, kind: input, shape index: {}]
  %s7 = inlined_call_operand.vmem [shape: f32[1,128], index: 7, kind: input, shape index: {}]
  %s8 = inlined_call_operand.hbm [shape: f32[32,128], index: 8, kind: input, shape index: {}]
  %s9 = inlined_call_operand.hbm [shape: f32[32,128], index: 9, kind: input, shape index: {}]
  %s10 = inlined_call_operand.vmem [shape: f32[1,128], index: 10, kind: input, shape index: {}]
  %s11 = inlined_call_operand.vmem [shape: f32[32,1], index: 11, kind: input, shape index: {}]
  %s12 = inlined_call_operand.<no memory space> [shape: f32[1,1], index: 12, kind: input, shape index: {}]
  %s13 = inlined_call_operand.vmem [shape: f32[2,1], index: 13, kind: output, shape index: {}]
  %s14 = sld [smem:[#allocation0]]
  $region82: #{tpu_custom_call.1} parent=0
    _
  %s16 = ssub.s32 1, %s14
  %s17 = scalar_select 0, %s16, %s14
  %v18 = vstv %s12
  %19 = vst [vmem:[#allocation2] sm:$0x1] %v18
  $region1: #{tpu_custom_call.1} parent=0
    #allocation3 [shape = 'u8[6144]{0}', space=vmem, size = 0x1800, scoped, tag = 'input window, operand 1, single buffered']
    #allocation4 [shape = 's32[1]{0}', space=sflag, size = 0x4, scoped, tag = 'scoped memory for tpu_custom_call.1']
    #allocation5 [shape = 'u8[16384]{0}', space=vmem, size = 0x4000, scoped, tag = 'input window, operand 5, single buffered']
    #allocation6 [shape = 's32[1]{0}', space=sflag, size = 0x4, scoped, tag = 'scoped memory for tpu_custom_call.1']
    #allocation7 [shape = 'u8[16384]{0}', space=vmem, size = 0x4000, scoped, tag = 'input window, operand 6, single buffered']
    #allocation8 [shape = 'u8[16384]{0}', space=vmem, size = 0x4000, scoped, tag = 'input window, operand 8, single buffered']
    #allocation9 [shape = 's32[1]{0}', space=sflag, size = 0x4, scoped, tag = 'scoped memory for tpu_custom_call.1']
    #allocation10 [shape = 'u8[16384]{0}', space=vmem, size = 0x4000, scoped, tag = 'input window, operand 9, single buffered']
    %20 = vsyncpa [#allocation4], 0
    %21 = vsyncpa [#allocation6], 0
    %22 = vsyncpa [#allocation9], 0
    // Predicated region
    $region2: #{tpu_custom_call.1} parent=1 // pred_check
      _
    $region3: #{tpu_custom_call.1} parent=1 // pred_check_branch
      %24 = sbr.rel (0) target = $region5
    $region4: #{tpu_custom_call.1} parent=1 // pred_region
      _
    $region5: #{tpu_custom_call.1} parent=1 // pred_fallthru
      _
    // Predicated region
    $region6: #{tpu_custom_call.1} parent=1 // pred_check
      _
    $region7: #{tpu_custom_call.1} parent=1 // pred_check_branch
      %26 = sbr.rel (0) target = $region9
    $region8: #{tpu_custom_call.1} parent=1 // pred_region
      %28 = vsyncadd [#allocation4], 0
      %s29 = sshll.u32 %s1, 4
      %s30 = int_to_ptr.hbm [resolvable:$true] %s29
      %s31 = sshll.u32 [#allocation3], 4
      %s32 = int_to_ptr.vmem [resolvable:$true] %s31
      %37 = dma.hbm_to_vmem [thread:$0]  %s30, 192, %s32, [#allocation4], 64, 64, 4
    $region9: #{tpu_custom_call.1} parent=1 // pred_fallthru
      _
    // Predicated region
    $region10: #{tpu_custom_call.1} parent=1 // pred_check
      _
    $region11: #{tpu_custom_call.1} parent=1 // pred_check_branch
      %39 = sbr.rel (0) target = $region13
    $region12: #{tpu_custom_call.1} parent=1 // pred_region
      _
    $region13: #{tpu_custom_call.1} parent=1 // pred_fallthru
      _
    // Predicated region
    $region14: #{tpu_custom_call.1} parent=1 // pred_check
      _
    $region15: #{tpu_custom_call.1} parent=1 // pred_check_branch
      %41 = sbr.rel (0) target = $region17
    $region16: #{tpu_custom_call.1} parent=1 // pred_region
      _
    $region17: #{tpu_custom_call.1} parent=1 // pred_fallthru
      _
    // Predicated region
    $region18: #{tpu_custom_call.1} parent=1 // pred_check
      _
    $region19: #{tpu_custom_call.1} parent=1 // pred_check_branch
      %43 = sbr.rel (0) target = $region21
    $region20: #{tpu_custom_call.1} parent=1 // pred_region
      _
    $region21: #{tpu_custom_call.1} parent=1 // pred_fallthru
      _
    // Predicated region
    $region22: #{tpu_custom_call.1} parent=1 // pred_check
      _
    $region23: #{tpu_custom_call.1} parent=1 // pred_check_branch
      %45 = sbr.rel (0) target = $region25
    $region24: #{tpu_custom_call.1} parent=1 // pred_region
      %47 = vsyncadd [#allocation6], 0
      %s48 = sshll.u32 %s5, 4
      %s49 = int_to_ptr.hbm [resolvable:$true] %s48
      %s50 = sshll.u32 [#allocation5], 4
      %s51 = int_to_ptr.vmem [resolvable:$true] %s50
      %56 = dma.hbm_to_vmem [thread:$0]  %s49, 512, %s51, [#allocation6], 128, 128, 8
    $region25: #{tpu_custom_call.1} parent=1 // pred_fallthru
      _
    // Predicated region
    $region26: #{tpu_custom_call.1} parent=1 // pred_check
      _
    $region27: #{tpu_custom_call.1} parent=1 // pred_check_branch
      %58 = sbr.rel (0) target = $region29
    $region28: #{tpu_custom_call.1} parent=1 // pred_region
      %60 = vsyncadd [#allocation6], 0
      %s61 = sshll.u32 %s6, 4
      %s62 = int_to_ptr.hbm [resolvable:$true] %s61
      %s63 = sshll.u32 [#allocation7], 4
      %s64 = int_to_ptr.vmem [resolvable:$true] %s63
      %69 = dma.hbm_to_vmem [thread:$0]  %s62, 512, %s64, [#allocation6], 128, 128, 8
    $region29: #{tpu_custom_call.1} parent=1 // pred_fallthru
      _
    // Predicated region
    $region30: #{tpu_custom_call.1} parent=1 // pred_check
      _
    $region31: #{tpu_custom_call.1} parent=1 // pred_check_branch
      %71 = sbr.rel (0) target = $region33
    $region32: #{tpu_custom_call.1} parent=1 // pred_region
      _
    $region33: #{tpu_custom_call.1} parent=1 // pred_fallthru
      _
    // Predicated region
    $region34: #{tpu_custom_call.1} parent=1 // pred_check
      _
    $region35: #{tpu_custom_call.1} parent=1 // pred_check_branch
      %73 = sbr.rel (0) target = $region37
    $region36: #{tpu_custom_call.1} parent=1 // pred_region
      %75 = vsyncadd [#allocation9], 0
      %s76 = sshll.u32 %s8, 4
      %s77 = int_to_ptr.hbm [resolvable:$true] %s76
      %s78 = sshll.u32 [#allocation8], 4
      %s79 = int_to_ptr.vmem [resolvable:$true] %s78
      %84 = dma.hbm_to_vmem [thread:$0]  %s77, 512, %s79, [#allocation9], 128, 128, 8
    $region37: #{tpu_custom_call.1} parent=1 // pred_fallthru
      _
    // Predicated region
    $region38: #{tpu_custom_call.1} parent=1 // pred_check
      _
    $region39: #{tpu_custom_call.1} parent=1 // pred_check_branch
      %86 = sbr.rel (0) target = $region41
    $region40: #{tpu_custom_call.1} parent=1 // pred_region
      %88 = vsyncadd [#allocation9], 0
      %s89 = sshll.u32 %s9, 4
      %s90 = int_to_ptr.hbm [resolvable:$true] %s89
      %s91 = sshll.u32 [#allocation10], 4
      %s92 = int_to_ptr.vmem [resolvable:$true] %s91
      %97 = dma.hbm_to_vmem [thread:$0]  %s90, 512, %s92, [#allocation9], 128, 128, 8
    $region41: #{tpu_custom_call.1} parent=1 // pred_fallthru
      _
    // Predicated region
    $region42: #{tpu_custom_call.1} parent=1 // pred_check
      _
    $region43: #{tpu_custom_call.1} parent=1 // pred_check_branch
      %99 = sbr.rel (0) target = $region45
    $region44: #{tpu_custom_call.1} parent=1 // pred_region
      _
    $region45: #{tpu_custom_call.1} parent=1 // pred_fallthru
      _
    // Predicated region
    $region46: #{tpu_custom_call.1} parent=1 // pred_check
      _
    $region47: #{tpu_custom_call.1} parent=1 // pred_check_branch
      %101 = sbr.rel (0) target = $region49
    $region48: #{tpu_custom_call.1} parent=1 // pred_region
      _
    $region49: #{tpu_custom_call.1} parent=1 // pred_fallthru
      _
    // Predicated region
    $region50: #{tpu_custom_call.1} parent=1 // pred_check
      _
    $region51: #{tpu_custom_call.1} parent=1 // pred_check_branch
      %103 = sbr.rel (0) target = $region53
    $region52: #{tpu_custom_call.1} parent=1 // pred_region
      _
    $region53: #{tpu_custom_call.1} parent=1 // pred_fallthru
      _
    // Predicated region
    $region54: #{tpu_custom_call.1} parent=1 // pred_check
      _
    $region55: #{tpu_custom_call.1} parent=1 // pred_check_branch
      %105 = sbr.rel (0) target = $region57
    $region56: #{tpu_custom_call.1} parent=1 // pred_region
      %107 = dma.done [#allocation4], 192
    $region57: #{tpu_custom_call.1} parent=1 // pred_fallthru
      _
    // Predicated region
    $region58: #{tpu_custom_call.1} parent=1 // pred_check
      _
    $region59: #{tpu_custom_call.1} parent=1 // pred_check_branch
      %109 = sbr.rel (0) target = $region61
    $region60: #{tpu_custom_call.1} parent=1 // pred_region
      %111 = dma.done [#allocation6], 512
    $region61: #{tpu_custom_call.1} parent=1 // pred_fallthru
      _
    // Predicated region
    $region62: #{tpu_custom_call.1} parent=1 // pred_check
      _
    $region63: #{tpu_custom_call.1} parent=1 // pred_check_branch
      %113 = sbr.rel (0) target = $region65
    $region64: #{tpu_custom_call.1} parent=1 // pred_region
      %115 = dma.done [#allocation6], 512
    $region65: #{tpu_custom_call.1} parent=1 // pred_fallthru
      _
    // Predicated region
    $region66: #{tpu_custom_call.1} parent=1 // pred_check
      _
    $region67: #{tpu_custom_call.1} parent=1 // pred_check_branch
      %117 = sbr.rel (0) target = $region69
    $region68: #{tpu_custom_call.1} parent=1 // pred_region
      %119 = dma.done [#allocation9], 512
    $region69: #{tpu_custom_call.1} parent=1 // pred_fallthru
      _
    // Predicated region
    $region70: #{tpu_custom_call.1} parent=1 // pred_check
      _
    $region71: #{tpu_custom_call.1} parent=1 // pred_check_branch
      %121 = sbr.rel (0) target = $region73
    $region72: #{tpu_custom_call.1} parent=1 // pred_region
      %123 = dma.done [#allocation9], 512
    $region73: #{tpu_custom_call.1} parent=1 // pred_fallthru
      _
    %v124 = vlaneseq
    %v125 = vshrl.u32 %v124, 7
    %v126 = vadd.s32 %v125, 8
    %v127 = vlaneseq
    %v128 = vand.u32 %v127, 127
    %v129 = vsub.s32 %v125, 2
    %v130 = vsub.s32 %v126, 2
    %vm131 = vcmp.eq.s32.totalorder %v128, %v129
    %vm132 = vcmp.eq.s32.totalorder %v128, %v130
    %vm133 = vcmp.ge.s32.totalorder %v125, 2
    %vm134 = vcmp.ge.s32.totalorder %v126, 2
    %vm135 = vmand %vm131, %vm133
    %vm136 = vmand %vm132, %vm134
    %v137 = vsel %vm135, 1.0, 0.0
    %v138 = vsel %vm136, 1.0, 0.0
    %v139 = vadd.s32 %v125, 2
    %v140 = vadd.s32 %v126, 2
    %vm141 = vcmp.eq.s32.totalorder %v128, %v139
    %vm142 = vcmp.eq.s32.totalorder %v128, %v140
    %vm143 = vcmp.lt.s32.totalorder %v125, 14
    %vm144 = vcmp.lt.s32.totalorder %v126, 14
    %vm145 = vmand %vm141, %vm143
    %vm146 = vmand %vm142, %vm144
    %v147 = vsel %vm145, 1.0, 0.0
    %v148 = vsel %vm146, 1.0, 0.0
    %v149 = vld [vmem:[%s0] sm:$0xff]
    %v150 = vld [vmem:[%s0 + $0x8] sm:$0xff]
    %v151 = vld [vmem:[#allocation3] sm:$0xf]
    %vm152 = vcmask 31744
    %v154 = vsel %vm152, %v149, 0
    %v157 = vsel %vm152, %v150, 0
    %vm159 = vcmask 1043456
    %v161 = vsel %vm159, %v151, 0
    %163 = vmatpush.msra.mxu0 0.0
    %164 = vmatpush.msra.mxu0 0.0
    %165 = vmatpush.msra.mxu0 0.0
    %166 = vmatpush.msra.mxu0 0.0
    %167 = vmatpush.msra.mxu0 0.0
    %168 = vmatpush.msra.mxu0 0.0
    %169 = vmatpush.msra.mxu0 0.0
    %170 = vmatpush.msra.mxu0 0.0
    %171 = vmatpush.msra.mxu0 0.0
    %172 = vmatpush.msra.mxu0 0.0
    %173 = vmatpush.msra.mxu0 0.0
    %174 = vmatpush.msra.mxu0 0.0
    %175 = vmatpush.msra.mxu0 0.0
    %176 = vmatpush.msra.mxu0 0.0
    %177 = vmatpush.msra.mxu0 0.0
    %178 = vmatpush.msra.mxu0 %v161
    %179 = vmatmul.f32.gmra.mxu0 %v154
    %v180 = vpop.f32.mrf.mxu0
    %v181 = vadd.f32 0.0, %v180
    %182 = vmatmul.f32.gmra.mxu0 %v157
    %v183 = vpop.f32.mrf.mxu0
    %v184 = vadd.f32 0.0, %v183
    %185 = vdwg.mxu0
    %s186 = scalar_lea.vmem [#allocation3], 4
    %v187 = vld [vmem:[%s186] sm:$0xf]
    %v189 = vsel %vm159, %v187, 0
    %191 = vmatpush.msra.mxu0 0.0
    %192 = vmatpush.msra.mxu0 0.0
    %193 = vmatpush.msra.mxu0 0.0
    %194 = vmatpush.msra.mxu0 0.0
    %195 = vmatpush.msra.mxu0 0.0
    %196 = vmatpush.msra.mxu0 0.0
    %197 = vmatpush.msra.mxu0 0.0
    %198 = vmatpush.msra.mxu0 0.0
    %199 = vmatpush.msra.mxu0 0.0
    %200 = vmatpush.msra.mxu0 0.0
    %201 = vmatpush.msra.mxu0 0.0
    %202 = vmatpush.msra.mxu0 0.0
    %203 = vmatpush.msra.mxu0 0.0
    %204 = vmatpush.msra.mxu0 0.0
    %205 = vmatpush.msra.mxu0 0.0
    %206 = vmatpush.msra.mxu0 %v189
    %207 = vmatmul.f32.gmra.mxu0 %v154
    %v208 = vpop.f32.mrf.mxu0
    %v209 = vadd.f32 0.0, %v208
    %210 = vmatmul.f32.gmra.mxu0 %v157
    %v211 = vpop.f32.mrf.mxu0
    %v212 = vadd.f32 0.0, %v211
    %213 = vdwg.mxu0
    %s214 = scalar_lea.vmem [#allocation3], 8
    %v215 = vld [vmem:[%s214] sm:$0xf]
    %v217 = vsel %vm159, %v215, 0
    %219 = vmatpush.msra.mxu0 0.0
    %220 = vmatpush.msra.mxu0 0.0
    %221 = vmatpush.msra.mxu0 0.0
    %222 = vmatpush.msra.mxu0 0.0
    %223 = vmatpush.msra.mxu0 0.0
    %224 = vmatpush.msra.mxu0 0.0
    %225 = vmatpush.msra.mxu0 0.0
    %226 = vmatpush.msra.mxu0 0.0
    %227 = vmatpush.msra.mxu0 0.0
    %228 = vmatpush.msra.mxu0 0.0
    %229 = vmatpush.msra.mxu0 0.0
    %230 = vmatpush.msra.mxu0 0.0
    %231 = vmatpush.msra.mxu0 0.0
    %232 = vmatpush.msra.mxu0 0.0
    %233 = vmatpush.msra.mxu0 0.0
    %234 = vmatpush.msra.mxu0 %v217
    %235 = vmatmul.f32.gmra.mxu0 %v154
    %v236 = vpop.f32.mrf.mxu0
    %v237 = vadd.f32 0.0, %v236
    %238 = vmatmul.f32.gmra.mxu0 %v157
    %v239 = vpop.f32.mrf.mxu0
    %v240 = vadd.f32 0.0, %v239
    %241 = vdwg.mxu0
    %vm242 = vcmask 130048
    %v244 = vsel %vm242, %v137, 0
    %v247 = vsel %vm242, %v138, 0
    %249 = vmatpush.msra.mxu0 0.0
    %250 = vmatpush.msra.mxu0 0.0
    %251 = vmatpush.msra.mxu0 0.0
    %252 = vmatpush.msra.mxu0 0.0
    %253 = vmatpush.msra.mxu0 0.0
    %254 = vmatpush.msra.mxu0 0.0
    %255 = vmatpush.msra.mxu0 0.0
    %256 = vmatpush.msra.mxu0 0.0
    %257 = vmatpush.msra.mxu0 0.0
    %258 = vmatpush.msra.mxu0 0.0
    %259 = vmatpush.msra.mxu0 0.0
    %260 = vmatpush.msra.mxu0 0.0
    %261 = vmatpush.msra.mxu0 0.0
    %262 = vmatpush.msra.mxu0 0.0
    %263 = vmatpush.msra.mxu0 %v184
    %264 = vmatpush.msra.mxu0 %v181
    %265 = vmatmul.f32.gmra.mxu0 %v244
    %v266 = vpop.f32.mrf.mxu0
    %v267 = vadd.f32 %v209, %v266
    %268 = vmatmul.f32.gmra.mxu0 %v247
    %v269 = vpop.f32.mrf.mxu0
    %v270 = vadd.f32 %v212, %v269
    %271 = vdwg.mxu0
    %v273 = vsel %vm242, %v147, 0
    %v276 = vsel %vm242, %v148, 0
    %278 = vmatpush.msra.mxu0 0.0
    %279 = vmatpush.msra.mxu0 0.0
    %280 = vmatpush.msra.mxu0 0.0
    %281 = vmatpush.msra.mxu0 0.0
    %282 = vmatpush.msra.mxu0 0.0
    %283 = vmatpush.msra.mxu0 0.0
    %284 = vmatpush.msra.mxu0 0.0
    %285 = vmatpush.msra.mxu0 0.0
    %286 = vmatpush.msra.mxu0 0.0
    %287 = vmatpush.msra.mxu0 0.0
    %288 = vmatpush.msra.mxu0 0.0
    %289 = vmatpush.msra.mxu0 0.0
    %290 = vmatpush.msra.mxu0 0.0
    %291 = vmatpush.msra.mxu0 0.0
    %292 = vmatpush.msra.mxu0 %v240
    %293 = vmatpush.msra.mxu0 %v237
    %294 = vmatmul.f32.gmra.mxu0 %v273
    %v295 = vpop.f32.mrf.mxu0
    %v296 = vadd.f32 0.0, %v295
    %297 = vmatmul.f32.gmra.mxu0 %v276
    %v298 = vpop.f32.mrf.mxu0
    %v299 = vadd.f32 0.0, %v298
    %300 = vdwg.mxu0
    %v301 = vadd.f32 %v267, %v296
    %v302 = vadd.f32 %v270, %v299
    %v303 = vld [vmem:[%s2] sm:$0x1]
    %v305 = vperm.slane %v303, 0
    %v307 = vadd.f32 %v301, %v305
    %v308 = vadd.f32 %v302, %v305
    %v309 = vmax.f32 %v307, 0.0
    %v310 = vmax.f32 %v308, 0.0
    %v311 = vld [vmem:[%s3] sm:$0xff]
    %v312 = vld [vmem:[%s3 + $0x8] sm:$0xff]
    %v314 = vsel %vm242, %v309, 0
    %v317 = vsel %vm242, %v310, 0
    %319 = vmatpush.msra.mxu0 0.0
    %320 = vmatpush.msra.mxu0 0.0
    %321 = vmatpush.msra.mxu0 0.0
    %322 = vmatpush.msra.mxu0 0.0
    %323 = vmatpush.msra.mxu0 0.0
    %324 = vmatpush.msra.mxu0 0.0
    %325 = vmatpush.msra.mxu0 0.0
    %326 = vmatpush.msra.mxu0 0.0
    %327 = vmatpush.msra.mxu0 0.0
    %328 = vmatpush.msra.mxu0 0.0
    %329 = vmatpush.msra.mxu0 0.0
    %330 = vmatpush.msra.mxu0 0.0
    %331 = vmatpush.msra.mxu0 0.0
    %332 = vmatpush.msra.mxu0 0.0
    %333 = vmatpush.msra.mxu0 %v312
    %334 = vmatpush.msra.mxu0 %v311
    %335 = vmatmul.f32.gmra.mxu0 %v314
    %v336 = vpop.f32.mrf.mxu0
    %v337 = vadd.f32 0.0, %v336
    %338 = vmatmul.f32.gmra.mxu0 %v317
    %v339 = vpop.f32.mrf.mxu0
    %v340 = vadd.f32 0.0, %v339
    %341 = vdwg.mxu0
    %s342 = scalar_lea.vmem %s3, 16
    %v343 = vld [vmem:[%s342] sm:$0xff]
    %v344 = vld [vmem:[%s342 + $0x8] sm:$0xff]
    %345 = vmatpush.msra.mxu0 0.0
    %346 = vmatpush.msra.mxu0 0.0
    %347 = vmatpush.msra.mxu0 0.0
    %348 = vmatpush.msra.mxu0 0.0
    %349 = vmatpush.msra.mxu0 0.0
    %350 = vmatpush.msra.mxu0 0.0
    %351 = vmatpush.msra.mxu0 0.0
    %352 = vmatpush.msra.mxu0 0.0
    %353 = vmatpush.msra.mxu0 0.0
    %354 = vmatpush.msra.mxu0 0.0
    %355 = vmatpush.msra.mxu0 0.0
    %356 = vmatpush.msra.mxu0 0.0
    %357 = vmatpush.msra.mxu0 0.0
    %358 = vmatpush.msra.mxu0 0.0
    %359 = vmatpush.msra.mxu0 %v344
    %360 = vmatpush.msra.mxu0 %v343
    %361 = vmatmul.f32.gmra.mxu0 %v314
    %v362 = vpop.f32.mrf.mxu0
    %v363 = vadd.f32 0.0, %v362
    %364 = vmatmul.f32.gmra.mxu0 %v317
    %v365 = vpop.f32.mrf.mxu0
    %v366 = vadd.f32 0.0, %v365
    %367 = vdwg.mxu0
    %s368 = scalar_lea.vmem %s3, 32
    %v369 = vld [vmem:[%s368] sm:$0xff]
    %v370 = vld [vmem:[%s368 + $0x8] sm:$0xff]
    %371 = vmatpush.msra.mxu0 0.0
    %372 = vmatpush.msra.mxu0 0.0
    %373 = vmatpush.msra.mxu0 0.0
    %374 = vmatpush.msra.mxu0 0.0
    %375 = vmatpush.msra.mxu0 0.0
    %376 = vmatpush.msra.mxu0 0.0
    %377 = vmatpush.msra.mxu0 0.0
    %378 = vmatpush.msra.mxu0 0.0
    %379 = vmatpush.msra.mxu0 0.0
    %380 = vmatpush.msra.mxu0 0.0
    %381 = vmatpush.msra.mxu0 0.0
    %382 = vmatpush.msra.mxu0 0.0
    %383 = vmatpush.msra.mxu0 0.0
    %384 = vmatpush.msra.mxu0 0.0
    %385 = vmatpush.msra.mxu0 %v370
    %386 = vmatpush.msra.mxu0 %v369
    %387 = vmatmul.f32.gmra.mxu0 %v314
    %v388 = vpop.f32.mrf.mxu0
    %v389 = vadd.f32 0.0, %v388
    %390 = vmatmul.f32.gmra.mxu0 %v317
    %v391 = vpop.f32.mrf.mxu0
    %v392 = vadd.f32 0.0, %v391
    %393 = vdwg.mxu0
    %394 = vmatpush.msra.mxu0 0.0
    %395 = vmatpush.msra.mxu0 0.0
    %396 = vmatpush.msra.mxu0 0.0
    %397 = vmatpush.msra.mxu0 0.0
    %398 = vmatpush.msra.mxu0 0.0
    %399 = vmatpush.msra.mxu0 0.0
    %400 = vmatpush.msra.mxu0 0.0
    %401 = vmatpush.msra.mxu0 0.0
    %402 = vmatpush.msra.mxu0 0.0
    %403 = vmatpush.msra.mxu0 0.0
    %404 = vmatpush.msra.mxu0 0.0
    %405 = vmatpush.msra.mxu0 0.0
    %406 = vmatpush.msra.mxu0 0.0
    %407 = vmatpush.msra.mxu0 0.0
    %408 = vmatpush.msra.mxu0 %v340
    %409 = vmatpush.msra.mxu0 %v337
    %410 = vmatmul.f32.gmra.mxu0 %v244
    %v411 = vpop.f32.mrf.mxu0
    %v412 = vadd.f32 %v363, %v411
    %413 = vmatmul.f32.gmra.mxu0 %v247
    %v414 = vpop.f32.mrf.mxu0
    %v415 = vadd.f32 %v366, %v414
    %416 = vdwg.mxu0
    %417 = vmatpush.msra.mxu0 0.0
    %418 = vmatpush.msra.mxu0 0.0
    %419 = vmatpush.msra.mxu0 0.0
    %420 = vmatpush.msra.mxu0 0.0
    %421 = vmatpush.msra.mxu0 0.0
    %422 = vmatpush.msra.mxu0 0.0
    %423 = vmatpush.msra.mxu0 0.0
    %424 = vmatpush.msra.mxu0 0.0
    %425 = vmatpush.msra.mxu0 0.0
    %426 = vmatpush.msra.mxu0 0.0
    %427 = vmatpush.msra.mxu0 0.0
    %428 = vmatpush.msra.mxu0 0.0
    %429 = vmatpush.msra.mxu0 0.0
    %430 = vmatpush.msra.mxu0 0.0
    %431 = vmatpush.msra.mxu0 %v392
    %432 = vmatpush.msra.mxu0 %v389
    %433 = vmatmul.f32.gmra.mxu0 %v273
    %v434 = vpop.f32.mrf.mxu0
    %v435 = vadd.f32 0.0, %v434
    %436 = vmatmul.f32.gmra.mxu0 %v276
    %v437 = vpop.f32.mrf.mxu0
    %v438 = vadd.f32 0.0, %v437
    %439 = vdwg.mxu0
    %v440 = vadd.f32 %v412, %v435
    %v441 = vadd.f32 %v415, %v438
    %v442 = vld [vmem:[%s4] sm:$0x1]
    %v444 = vperm.slane %v442, 0
    %v446 = vadd.f32 %v440, %v444
    %v447 = vadd.f32 %v441, %v444
    %v448 = vmax.f32 %v446, 0.0
    %v449 = vmax.f32 %v447, 0.0
    %v450 = vld [vmem:[#allocation5] sm:$0xff]
    %v451 = vld [vmem:[#allocation5 + $0x8] sm:$0xff]
    %v452 = vld [vmem:[#allocation5 + $0x10] sm:$0xff]
    %v453 = vld [vmem:[#allocation5 + $0x18] sm:$0xff]
    %v454 = vld [vmem:[%s7] sm:$0x1]
    %v456 = vperm.slane %v454, 0
    %vm458 = vcmask 261120
    %v460 = vsel %vm458, %v448, 0
    %v463 = vsel %vm458, %v449, 0
    %465 = vmatpush.msra.mxu0 0.0
    %466 = vmatpush.msra.mxu0 0.0
    %467 = vmatpush.msra.mxu0 0.0
    %468 = vmatpush.msra.mxu0 0.0
    %469 = vmatpush.msra.mxu0 0.0
    %470 = vmatpush.msra.mxu0 0.0
    %471 = vmatpush.msra.mxu0 0.0
    %472 = vmatpush.msra.mxu0 0.0
    %473 = vmatpush.msra.mxu0 0.0
    %474 = vmatpush.msra.mxu0 0.0
    %475 = vmatpush.msra.mxu0 0.0
    %476 = vmatpush.msra.mxu0 0.0
    %477 = vmatpush.msra.mxu0 %v453
    %478 = vmatpush.msra.mxu0 %v452
    %479 = vmatpush.msra.mxu0 %v451
    %480 = vmatpush.msra.mxu0 %v450
    %481 = vmatmul.f32.gmra.mxu0 %v460
    %v482 = vpop.f32.mrf.mxu0
    %v483 = vadd.f32 %v456, %v482
    %484 = vmatmul.f32.gmra.mxu0 %v463
    %v485 = vpop.f32.mrf.mxu0
    %v486 = vadd.f32 %v456, %v485
    %487 = vdwg.mxu0
    %v488 = vld [vmem:[#allocation7] sm:$0xff]
    %v489 = vld [vmem:[#allocation7 + $0x8] sm:$0xff]
    %v490 = vld [vmem:[#allocation7 + $0x10] sm:$0xff]
    %v491 = vld [vmem:[#allocation7 + $0x18] sm:$0xff]
    %v493 = vsel %vm458, 0.0, 0
    %495 = vmatpush.msra.mxu0 0.0
    %496 = vmatpush.msra.mxu0 0.0
    %497 = vmatpush.msra.mxu0 0.0
    %498 = vmatpush.msra.mxu0 0.0
    %499 = vmatpush.msra.mxu0 0.0
    %500 = vmatpush.msra.mxu0 0.0
    %501 = vmatpush.msra.mxu0 0.0
    %502 = vmatpush.msra.mxu0 0.0
    %503 = vmatpush.msra.mxu0 0.0
    %504 = vmatpush.msra.mxu0 0.0
    %505 = vmatpush.msra.mxu0 0.0
    %506 = vmatpush.msra.mxu0 0.0
    %507 = vmatpush.msra.mxu0 %v491
    %508 = vmatpush.msra.mxu0 %v490
    %509 = vmatpush.msra.mxu0 %v489
    %510 = vmatpush.msra.mxu0 %v488
    %511 = vmatmul.f32.gmra.mxu0 %v493
    %v512 = vpop.f32.mrf.mxu0
    %v513 = vadd.f32 0.0, %v512
    %514 = vdwg.mxu0
    %v515 = vadd.f32 %v483, %v513
    %v516 = vxor.u32 %v515, 2147483648
    %v517 = vmul.f32 %v516, 1.442695
    %v518 = vpow.pop %v517
    %v519 = vadd.f32 %v518, 1.0
    %v520 = vrcp.pop %v519
    %v521 = vmul.f32 %v519, %v520
    %v522 = vsub.f32 1.0, %v521
    %v523 = vmul.f32 %v520, %v522
    %v524 = vadd.f32 %v520, %v523
    %vm525 = vweird.f32 %v519
    %vm526 = vweird.f32 %v520
    %vm527 = vmor %vm525, %vm526
    %v528 = vsel %vm527, %v520, %v524
    %v529 = vand.u32 2147483647, %v519
    %vm530 = vcmp.eq.f32.partialorder %v529, 8.507059e+37
    %v531 = vand.u32 %v519, 2147483648
    %v532 = vor.u32 1.1754944e-38, %v531
    %v533 = vsel %vm530, %v532, %v528
    %v534 = vmul.f32 1.0, %v533
    %v535 = vtanh.pop %v515
    %v536 = vmul.f32 %v534, 0.0
    %538 = vrot.lane.b32.xlu0 %v535, 64
    %v539 = vpop.permute.xlu0 %538
    %v541 = vmul.f32 %v534, %v539
    %543 = vrot.lane.b32.xlu0 %v541, 32
    %v544 = vpop.permute.xlu0 %543
    %v546 = vadd.f32 %v536, %v544
    %v547 = vtanh.pop %v546
    %549 = vrot.lane.b32.xlu0 %v547, 64
    %v550 = vpop.permute.xlu0 %549
    %v552 = vmul.f32 %v534, %v550
    %v553 = vld [vmem:[#allocation10] sm:$0xff]
    %v554 = vld [vmem:[#allocation10 + $0x8] sm:$0xff]
    %v555 = vld [vmem:[#allocation10 + $0x10] sm:$0xff]
    %v556 = vld [vmem:[#allocation10 + $0x18] sm:$0xff]
    %v557 = vld [vmem:[#allocation8] sm:$0xff]
    %v558 = vld [vmem:[#allocation8 + $0x8] sm:$0xff]
    %v559 = vld [vmem:[#allocation8 + $0x10] sm:$0xff]
    %v560 = vld [vmem:[#allocation8 + $0x18] sm:$0xff]
    %v561 = vld [vmem:[%s10] sm:$0x1]
    %562 = vmatpush.msra.mxu0 0.0
    %563 = vmatpush.msra.mxu0 0.0
    %564 = vmatpush.msra.mxu0 0.0
    %565 = vmatpush.msra.mxu0 0.0
    %566 = vmatpush.msra.mxu0 0.0
    %567 = vmatpush.msra.mxu0 0.0
    %568 = vmatpush.msra.mxu0 0.0
    %569 = vmatpush.msra.mxu0 0.0
    %570 = vmatpush.msra.mxu0 0.0
    %571 = vmatpush.msra.mxu0 0.0
    %572 = vmatpush.msra.mxu0 0.0
    %573 = vmatpush.msra.mxu0 0.0
    %574 = vmatpush.msra.mxu0 %v556
    %575 = vmatpush.msra.mxu0 %v555
    %576 = vmatpush.msra.mxu0 %v554
    %577 = vmatpush.msra.mxu0 %v553
    %578 = vmatmul.f32.gmra.mxu0 %v493
    %v579 = vpop.f32.mrf.mxu0
    %v580 = vadd.f32 0.0, %v579
    %581 = vdwg.mxu0
    %583 = vrot.lane.b32.xlu0 %v552, 32
    %v584 = vpop.permute.xlu0 %583
    %v585 = vsel %vm458, %v584, 0
    %587 = vmatpush.msra.mxu0 0.0
    %588 = vmatpush.msra.mxu0 0.0
    %589 = vmatpush.msra.mxu0 0.0
    %590 = vmatpush.msra.mxu0 0.0
    %591 = vmatpush.msra.mxu0 0.0
    %592 = vmatpush.msra.mxu0 0.0
    %593 = vmatpush.msra.mxu0 0.0
    %594 = vmatpush.msra.mxu0 0.0
    %595 = vmatpush.msra.mxu0 0.0
    %596 = vmatpush.msra.mxu0 0.0
    %597 = vmatpush.msra.mxu0 0.0
    %598 = vmatpush.msra.mxu0 0.0
    %599 = vmatpush.msra.mxu0 %v560
    %600 = vmatpush.msra.mxu0 %v559
    %601 = vmatpush.msra.mxu0 %v558
    %602 = vmatpush.msra.mxu0 %v557
    %603 = vmatmul.f32.gmra.mxu0 %v585
    %v604 = vpop.f32.mrf.mxu0
    %v605 = vadd.f32 %v580, %v604
    %606 = vdwg.mxu0
    %v608 = vperm.slane %v561, 0
    %v610 = vadd.f32 %v605, %v608
    %v611 = vxor.u32 %v610, 2147483648
    %v612 = vmul.f32 %v611, 1.442695
    %v613 = vpow.pop %v612
    %v614 = vadd.f32 %v613, 1.0
    %v615 = vrcp.pop %v614
    %v616 = vmul.f32 %v614, %v615
    %v617 = vsub.f32 1.0, %v616
    %v618 = vmul.f32 %v615, %v617
    %v619 = vadd.f32 %v615, %v618
    %vm620 = vweird.f32 %v614
    %vm621 = vweird.f32 %v615
    %vm622 = vmor %vm620, %vm621
    %v623 = vsel %vm622, %v615, %v619
    %v624 = vand.u32 2147483647, %v614
    %vm625 = vcmp.eq.f32.partialorder %v624, 8.507059e+37
    %v626 = vand.u32 %v614, 2147483648
    %v627 = vor.u32 1.1754944e-38, %v626
    %v628 = vsel %vm625, %v627, %v623
    %v629 = vmul.f32 1.0, %v628
    %v630 = vtanh.pop %v610
    %v631 = vmul.f32 %v629, 0.0
    %633 = vrot.lane.b32.xlu0 %v630, 64
    %v634 = vpop.permute.xlu0 %633
    %v636 = vmul.f32 %v629, %v634
    %638 = vrot.lane.b32.xlu0 %v636, 32
    %v639 = vpop.permute.xlu0 %638
    %v641 = vadd.f32 %v631, %v639
    %v642 = vtanh.pop %v641
    %644 = vrot.lane.b32.xlu0 %v642, 64
    %v645 = vpop.permute.xlu0 %644
    %v647 = vmul.f32 %v629, %v645
    %648 = vmatpush.msra.mxu0 0.0
    %649 = vmatpush.msra.mxu0 0.0
    %650 = vmatpush.msra.mxu0 0.0
    %651 = vmatpush.msra.mxu0 0.0
    %652 = vmatpush.msra.mxu0 0.0
    %653 = vmatpush.msra.mxu0 0.0
    %654 = vmatpush.msra.mxu0 0.0
    %655 = vmatpush.msra.mxu0 0.0
    %656 = vmatpush.msra.mxu0 0.0
    %657 = vmatpush.msra.mxu0 0.0
    %658 = vmatpush.msra.mxu0 0.0
    %659 = vmatpush.msra.mxu0 0.0
    %660 = vmatpush.msra.mxu0 %v491
    %661 = vmatpush.msra.mxu0 %v490
    %662 = vmatpush.msra.mxu0 %v489
    %663 = vmatpush.msra.mxu0 %v488
    %664 = vmatmul.f32.gmra.mxu0 %v585
    %v665 = vpop.f32.mrf.mxu0
    %v666 = vadd.f32 0.0, %v665
    %667 = vdwg.mxu0
    %v669 = vrot.slane %v666, 6
    %v671 = vadd.f32 %v483, %v669
    %v672 = vxor.u32 %v671, 2147483648
    %v673 = vmul.f32 %v672, 1.442695
    %v674 = vpow.pop %v673
    %v675 = vadd.f32 %v674, 1.0
    %v676 = vrcp.pop %v675
    %v677 = vmul.f32 %v675, %v676
    %v678 = vsub.f32 1.0, %v677
    %v679 = vmul.f32 %v676, %v678
    %v680 = vadd.f32 %v676, %v679
    %vm681 = vweird.f32 %v675
    %vm682 = vweird.f32 %v676
    %vm683 = vmor %vm681, %vm682
    %v684 = vsel %vm683, %v676, %v680
    %v685 = vand.u32 2147483647, %v675
    %vm686 = vcmp.eq.f32.partialorder %v685, 8.507059e+37
    %v687 = vand.u32 %v675, 2147483648
    %v688 = vor.u32 1.1754944e-38, %v687
    %v689 = vsel %vm686, %v688, %v684
    %v690 = vmul.f32 1.0, %v689
    %v691 = vtanh.pop %v671
    %v693 = vrot.slane %v546, 6
    %v695 = vmul.f32 %v690, %v693
    %697 = vrot.lane.b32.xlu0 %v691, 64
    %v698 = vpop.permute.xlu0 %697
    %v700 = vmul.f32 %v690, %v698
    %702 = vrot.lane.b32.xlu0 %v700, 32
    %v703 = vpop.permute.xlu0 %702
    %v705 = vadd.f32 %v695, %v703
    %v706 = vtanh.pop %v705
    %708 = vrot.lane.b32.xlu0 %v706, 64
    %v709 = vpop.permute.xlu0 %708
    %v711 = vmul.f32 %v690, %v709
    %713 = vrot.lane.b32.xlu0 %v647, 32
    %v714 = vpop.permute.xlu0 %713
    %v715 = vsel %vm458, %v714, 0
    %717 = vmatpush.msra.mxu0 0.0
    %718 = vmatpush.msra.mxu0 0.0
    %719 = vmatpush.msra.mxu0 0.0
    %720 = vmatpush.msra.mxu0 0.0
    %721 = vmatpush.msra.mxu0 0.0
    %722 = vmatpush.msra.mxu0 0.0
    %723 = vmatpush.msra.mxu0 0.0
    %724 = vmatpush.msra.mxu0 0.0
    %725 = vmatpush.msra.mxu0 0.0
    %726 = vmatpush.msra.mxu0 0.0
    %727 = vmatpush.msra.mxu0 0.0
    %728 = vmatpush.msra.mxu0 0.0
    %729 = vmatpush.msra.mxu0 %v556
    %730 = vmatpush.msra.mxu0 %v555
    %731 = vmatpush.msra.mxu0 %v554
    %732 = vmatpush.msra.mxu0 %v553
    %733 = vmatmul.f32.gmra.mxu0 %v715
    %v734 = vpop.f32.mrf.mxu0
    %v735 = vadd.f32 0.0, %v734
    %736 = vdwg.mxu0
    %v738 = vrot.slane %v711, 2
    %739 = vrot.lane.b32.xlu0 %v738, 32
    %v740 = vpop.permute.xlu0 %739
    %v741 = vsel %vm458, %v740, 0
    %743 = vmatpush.msra.mxu0 0.0
    %744 = vmatpush.msra.mxu0 0.0
    %745 = vmatpush.msra.mxu0 0.0
    %746 = vmatpush.msra.mxu0 0.0
    %747 = vmatpush.msra.mxu0 0.0
    %748 = vmatpush.msra.mxu0 0.0
    %749 = vmatpush.msra.mxu0 0.0
    %750 = vmatpush.msra.mxu0 0.0
    %751 = vmatpush.msra.mxu0 0.0
    %752 = vmatpush.msra.mxu0 0.0
    %753 = vmatpush.msra.mxu0 0.0
    %754 = vmatpush.msra.mxu0 0.0
    %755 = vmatpush.msra.mxu0 %v560
    %756 = vmatpush.msra.mxu0 %v559
    %757 = vmatpush.msra.mxu0 %v558
    %758 = vmatpush.msra.mxu0 %v557
    %759 = vmatmul.f32.gmra.mxu0 %v741
    %v760 = vpop.f32.mrf.mxu0
    %v761 = vadd.f32 %v735, %v760
    %762 = vdwg.mxu0
    %v763 = vadd.f32 %v761, %v608
    %v764 = vxor.u32 %v763, 2147483648
    %v765 = vmul.f32 %v764, 1.442695
    %v766 = vpow.pop %v765
    %v767 = vadd.f32 %v766, 1.0
    %v768 = vrcp.pop %v767
    %v769 = vmul.f32 %v767, %v768
    %v770 = vsub.f32 1.0, %v769
    %v771 = vmul.f32 %v768, %v770
    %v772 = vadd.f32 %v768, %v771
    %vm773 = vweird.f32 %v767
    %vm774 = vweird.f32 %v768
    %vm775 = vmor %vm773, %vm774
    %v776 = vsel %vm775, %v768, %v772
    %v777 = vand.u32 2147483647, %v767
    %vm778 = vcmp.eq.f32.partialorder %v777, 8.507059e+37
    %v779 = vand.u32 %v767, 2147483648
    %v780 = vor.u32 1.1754944e-38, %v779
    %v781 = vsel %vm778, %v780, %v776
    %v782 = vmul.f32 1.0, %v781
    %v783 = vtanh.pop %v763
    %v784 = vmul.f32 %v782, %v641
    %786 = vrot.lane.b32.xlu0 %v783, 64
    %v787 = vpop.permute.xlu0 %786
    %v789 = vmul.f32 %v782, %v787
    %791 = vrot.lane.b32.xlu0 %v789, 32
    %v792 = vpop.permute.xlu0 %791
    %v794 = vadd.f32 %v784, %v792
    %v795 = vtanh.pop %v794
    %797 = vrot.lane.b32.xlu0 %v795, 64
    %v798 = vpop.permute.xlu0 %797
    %v800 = vmul.f32 %v782, %v798
    %801 = vmatpush.msra.mxu0 0.0
    %802 = vmatpush.msra.mxu0 0.0
    %803 = vmatpush.msra.mxu0 0.0
    %804 = vmatpush.msra.mxu0 0.0
    %805 = vmatpush.msra.mxu0 0.0
    %806 = vmatpush.msra.mxu0 0.0
    %807 = vmatpush.msra.mxu0 0.0
    %808 = vmatpush.msra.mxu0 0.0
    %809 = vmatpush.msra.mxu0 0.0
    %810 = vmatpush.msra.mxu0 0.0
    %811 = vmatpush.msra.mxu0 0.0
    %812 = vmatpush.msra.mxu0 0.0
    %813 = vmatpush.msra.mxu0 %v491
    %814 = vmatpush.msra.mxu0 %v490
    %815 = vmatpush.msra.mxu0 %v489
    %816 = vmatpush.msra.mxu0 %v488
    %817 = vmatmul.f32.gmra.mxu0 %v741
    %v818 = vpop.f32.mrf.mxu0
    %v819 = vadd.f32 0.0, %v818
    %820 = vdwg.mxu0
    %v822 = vrot.slane %v819, 4
    %v824 = vadd.f32 %v483, %v822
    %v825 = vxor.u32 %v824, 2147483648
    %v826 = vmul.f32 %v825, 1.442695
    %v827 = vpow.pop %v826
    %v828 = vadd.f32 %v827, 1.0
    %v829 = vrcp.pop %v828
    %v830 = vmul.f32 %v828, %v829
    %v831 = vsub.f32 1.0, %v830
    %v832 = vmul.f32 %v829, %v831
    %v833 = vadd.f32 %v829, %v832
    %vm834 = vweird.f32 %v828
    %vm835 = vweird.f32 %v829
    %vm836 = vmor %vm834, %vm835
    %v837 = vsel %vm836, %v829, %v833
    %v838 = vand.u32 2147483647, %v828
    %vm839 = vcmp.eq.f32.partialorder %v838, 8.507059e+37
    %v840 = vand.u32 %v828, 2147483648
    %v841 = vor.u32 1.1754944e-38, %v840
    %v842 = vsel %vm839, %v841, %v837
    %v843 = vmul.f32 1.0, %v842
    %v844 = vtanh.pop %v824
    %v846 = vrot.slane %v705, 6
    %v848 = vmul.f32 %v843, %v846
    %850 = vrot.lane.b32.xlu0 %v844, 64
    %v851 = vpop.permute.xlu0 %850
    %v853 = vmul.f32 %v843, %v851
    %855 = vrot.lane.b32.xlu0 %v853, 32
    %v856 = vpop.permute.xlu0 %855
    %v858 = vadd.f32 %v848, %v856
    %v859 = vtanh.pop %v858
    %861 = vrot.lane.b32.xlu0 %v859, 64
    %v862 = vpop.permute.xlu0 %861
    %v864 = vmul.f32 %v843, %v862
    %866 = vrot.lane.b32.xlu0 %v800, 32
    %v867 = vpop.permute.xlu0 %866
    %v868 = vsel %vm458, %v867, 0
    %870 = vmatpush.msra.mxu0 0.0
    %871 = vmatpush.msra.mxu0 0.0
    %872 = vmatpush.msra.mxu0 0.0
    %873 = vmatpush.msra.mxu0 0.0
    %874 = vmatpush.msra.mxu0 0.0
    %875 = vmatpush.msra.mxu0 0.0
    %876 = vmatpush.msra.mxu0 0.0
    %877 = vmatpush.msra.mxu0 0.0
    %878 = vmatpush.msra.mxu0 0.0
    %879 = vmatpush.msra.mxu0 0.0
    %880 = vmatpush.msra.mxu0 0.0
    %881 = vmatpush.msra.mxu0 0.0
    %882 = vmatpush.msra.mxu0 %v556
    %883 = vmatpush.msra.mxu0 %v555
    %884 = vmatpush.msra.mxu0 %v554
    %885 = vmatpush.msra.mxu0 %v553
    %886 = vmatmul.f32.gmra.mxu0 %v868
    %v887 = vpop.f32.mrf.mxu0
    %v888 = vadd.f32 0.0, %v887
    %889 = vdwg.mxu0
    %v891 = vrot.slane %v864, 4
    %892 = vrot.lane.b32.xlu0 %v891, 32
    %v893 = vpop.permute.xlu0 %892
    %v894 = vsel %vm458, %v893, 0
    %896 = vmatpush.msra.mxu0 0.0
    %897 = vmatpush.msra.mxu0 0.0
    %898 = vmatpush.msra.mxu0 0.0
    %899 = vmatpush.msra.mxu0 0.0
    %900 = vmatpush.msra.mxu0 0.0
    %901 = vmatpush.msra.mxu0 0.0
    %902 = vmatpush.msra.mxu0 0.0
    %903 = vmatpush.msra.mxu0 0.0
    %904 = vmatpush.msra.mxu0 0.0
    %905 = vmatpush.msra.mxu0 0.0
    %906 = vmatpush.msra.mxu0 0.0
    %907 = vmatpush.msra.mxu0 0.0
    %908 = vmatpush.msra.mxu0 %v560
    %909 = vmatpush.msra.mxu0 %v559
    %910 = vmatpush.msra.mxu0 %v558
    %911 = vmatpush.msra.mxu0 %v557
    %912 = vmatmul.f32.gmra.mxu0 %v894
    %v913 = vpop.f32.mrf.mxu0
    %v914 = vadd.f32 %v888, %v913
    %915 = vdwg.mxu0
    %v916 = vadd.f32 %v914, %v608
    %v917 = vxor.u32 %v916, 2147483648
    %v918 = vmul.f32 %v917, 1.442695
    %v919 = vpow.pop %v918
    %v920 = vadd.f32 %v919, 1.0
    %v921 = vrcp.pop %v920
    %v922 = vmul.f32 %v920, %v921
    %v923 = vsub.f32 1.0, %v922
    %v924 = vmul.f32 %v921, %v923
    %v925 = vadd.f32 %v921, %v924
    %vm926 = vweird.f32 %v920
    %vm927 = vweird.f32 %v921
    %vm928 = vmor %vm926, %vm927
    %v929 = vsel %vm928, %v921, %v925
    %v930 = vand.u32 2147483647, %v920
    %vm931 = vcmp.eq.f32.partialorder %v930, 8.507059e+37
    %v932 = vand.u32 %v920, 2147483648
    %v933 = vor.u32 1.1754944e-38, %v932
    %v934 = vsel %vm931, %v933, %v929
    %v935 = vmul.f32 1.0, %v934
    %v936 = vtanh.pop %v916
    %v937 = vmul.f32 %v935, %v794
    %939 = vrot.lane.b32.xlu0 %v936, 64
    %v940 = vpop.permute.xlu0 %939
    %v942 = vmul.f32 %v935, %v940
    %944 = vrot.lane.b32.xlu0 %v942, 32
    %v945 = vpop.permute.xlu0 %944
    %v947 = vadd.f32 %v937, %v945
    %v948 = vtanh.pop %v947
    %950 = vrot.lane.b32.xlu0 %v948, 64
    %v951 = vpop.permute.xlu0 %950
    %v953 = vmul.f32 %v935, %v951
    %954 = vmatpush.msra.mxu0 0.0
    %955 = vmatpush.msra.mxu0 0.0
    %956 = vmatpush.msra.mxu0 0.0
    %957 = vmatpush.msra.mxu0 0.0
    %958 = vmatpush.msra.mxu0 0.0
    %959 = vmatpush.msra.mxu0 0.0
    %960 = vmatpush.msra.mxu0 0.0
    %961 = vmatpush.msra.mxu0 0.0
    %962 = vmatpush.msra.mxu0 0.0
    %963 = vmatpush.msra.mxu0 0.0
    %964 = vmatpush.msra.mxu0 0.0
    %965 = vmatpush.msra.mxu0 0.0
    %966 = vmatpush.msra.mxu0 %v491
    %967 = vmatpush.msra.mxu0 %v490
    %968 = vmatpush.msra.mxu0 %v489
    %969 = vmatpush.msra.mxu0 %v488
    %970 = vmatmul.f32.gmra.mxu0 %v894
    %v971 = vpop.f32.mrf.mxu0
    %v972 = vadd.f32 0.0, %v971
    %973 = vdwg.mxu0
    %v975 = vrot.slane %v972, 2
    %v977 = vadd.f32 %v483, %v975
    %v978 = vxor.u32 %v977, 2147483648
    %v979 = vmul.f32 %v978, 1.442695
    %v980 = vpow.pop %v979
    %v981 = vadd.f32 %v980, 1.0
    %v982 = vrcp.pop %v981
    %v983 = vmul.f32 %v981, %v982
    %v984 = vsub.f32 1.0, %v983
    %v985 = vmul.f32 %v982, %v984
    %v986 = vadd.f32 %v982, %v985
    %vm987 = vweird.f32 %v981
    %vm988 = vweird.f32 %v982
    %vm989 = vmor %vm987, %vm988
    %v990 = vsel %vm989, %v982, %v986
    %v991 = vand.u32 2147483647, %v981
    %vm992 = vcmp.eq.f32.partialorder %v991, 8.507059e+37
    %v993 = vand.u32 %v981, 2147483648
    %v994 = vor.u32 1.1754944e-38, %v993
    %v995 = vsel %vm992, %v994, %v990
    %v996 = vmul.f32 1.0, %v995
    %v997 = vtanh.pop %v977
    %v999 = vrot.slane %v858, 6
    %v1001 = vmul.f32 %v996, %v999
    %1003 = vrot.lane.b32.xlu0 %v997, 64
    %v1004 = vpop.permute.xlu0 %1003
    %v1006 = vmul.f32 %v996, %v1004
    %1008 = vrot.lane.b32.xlu0 %v1006, 32
    %v1009 = vpop.permute.xlu0 %1008
    %v1011 = vadd.f32 %v1001, %v1009
    %v1012 = vtanh.pop %v1011
    %1014 = vrot.lane.b32.xlu0 %v1012, 64
    %v1015 = vpop.permute.xlu0 %1014
    %v1017 = vmul.f32 %v996, %v1015
    %1019 = vrot.lane.b32.xlu0 %v953, 32
    %v1020 = vpop.permute.xlu0 %1019
    %v1021 = vsel %vm458, %v1020, 0
    %1023 = vmatpush.msra.mxu0 0.0
    %1024 = vmatpush.msra.mxu0 0.0
    %1025 = vmatpush.msra.mxu0 0.0
    %1026 = vmatpush.msra.mxu0 0.0
    %1027 = vmatpush.msra.mxu0 0.0
    %1028 = vmatpush.msra.mxu0 0.0
    %1029 = vmatpush.msra.mxu0 0.0
    %1030 = vmatpush.msra.mxu0 0.0
    %1031 = vmatpush.msra.mxu0 0.0
    %1032 = vmatpush.msra.mxu0 0.0
    %1033 = vmatpush.msra.mxu0 0.0
    %1034 = vmatpush.msra.mxu0 0.0
    %1035 = vmatpush.msra.mxu0 %v556
    %1036 = vmatpush.msra.mxu0 %v555
    %1037 = vmatpush.msra.mxu0 %v554
    %1038 = vmatpush.msra.mxu0 %v553
    %1039 = vmatmul.f32.gmra.mxu0 %v1021
    %v1040 = vpop.f32.mrf.mxu0
    %v1041 = vadd.f32 0.0, %v1040
    %1042 = vdwg.mxu0
    %v1044 = vrot.slane %v1017, 6
    %1045 = vrot.lane.b32.xlu0 %v1044, 32
    %v1046 = vpop.permute.xlu0 %1045
    %v1047 = vsel %vm458, %v1046, 0
    %1049 = vmatpush.msra.mxu0 0.0
    %1050 = vmatpush.msra.mxu0 0.0
    %1051 = vmatpush.msra.mxu0 0.0
    %1052 = vmatpush.msra.mxu0 0.0
    %1053 = vmatpush.msra.mxu0 0.0
    %1054 = vmatpush.msra.mxu0 0.0
    %1055 = vmatpush.msra.mxu0 0.0
    %1056 = vmatpush.msra.mxu0 0.0
    %1057 = vmatpush.msra.mxu0 0.0
    %1058 = vmatpush.msra.mxu0 0.0
    %1059 = vmatpush.msra.mxu0 0.0
    %1060 = vmatpush.msra.mxu0 0.0
    %1061 = vmatpush.msra.mxu0 %v560
    %1062 = vmatpush.msra.mxu0 %v559
    %1063 = vmatpush.msra.mxu0 %v558
    %1064 = vmatpush.msra.mxu0 %v557
    %1065 = vmatmul.f32.gmra.mxu0 %v1047
    %v1066 = vpop.f32.mrf.mxu0
    %v1067 = vadd.f32 %v1041, %v1066
    %1068 = vdwg.mxu0
    %v1069 = vadd.f32 %v1067, %v608
    %v1070 = vxor.u32 %v1069, 2147483648
    %v1071 = vmul.f32 %v1070, 1.442695
    %v1072 = vpow.pop %v1071
    %v1073 = vadd.f32 %v1072, 1.0
    %v1074 = vrcp.pop %v1073
    %v1075 = vmul.f32 %v1073, %v1074
    %v1076 = vsub.f32 1.0, %v1075
    %v1077 = vmul.f32 %v1074, %v1076
    %v1078 = vadd.f32 %v1074, %v1077
    %vm1079 = vweird.f32 %v1073
    %vm1080 = vweird.f32 %v1074
    %vm1081 = vmor %vm1079, %vm1080
    %v1082 = vsel %vm1081, %v1074, %v1078
    %v1083 = vand.u32 2147483647, %v1073
    %vm1084 = vcmp.eq.f32.partialorder %v1083, 8.507059e+37
    %v1085 = vand.u32 %v1073, 2147483648
    %v1086 = vor.u32 1.1754944e-38, %v1085
    %v1087 = vsel %vm1084, %v1086, %v1082
    %v1088 = vmul.f32 1.0, %v1087
    %v1089 = vtanh.pop %v1069
    %v1090 = vmul.f32 %v1088, %v947
    %1092 = vrot.lane.b32.xlu0 %v1089, 64
    %v1093 = vpop.permute.xlu0 %1092
    %v1095 = vmul.f32 %v1088, %v1093
    %1097 = vrot.lane.b32.xlu0 %v1095, 32
    %v1098 = vpop.permute.xlu0 %1097
    %v1100 = vadd.f32 %v1090, %v1098
    %v1101 = vtanh.pop %v1100
    %1103 = vrot.lane.b32.xlu0 %v1101, 64
    %v1104 = vpop.permute.xlu0 %1103
    %v1106 = vmul.f32 %v1088, %v1104
    %1107 = vmatpush.msra.mxu0 0.0
    %1108 = vmatpush.msra.mxu0 0.0
    %1109 = vmatpush.msra.mxu0 0.0
    %1110 = vmatpush.msra.mxu0 0.0
    %1111 = vmatpush.msra.mxu0 0.0
    %1112 = vmatpush.msra.mxu0 0.0
    %1113 = vmatpush.msra.mxu0 0.0
    %1114 = vmatpush.msra.mxu0 0.0
    %1115 = vmatpush.msra.mxu0 0.0
    %1116 = vmatpush.msra.mxu0 0.0
    %1117 = vmatpush.msra.mxu0 0.0
    %1118 = vmatpush.msra.mxu0 0.0
    %1119 = vmatpush.msra.mxu0 %v491
    %1120 = vmatpush.msra.mxu0 %v490
    %1121 = vmatpush.msra.mxu0 %v489
    %1122 = vmatpush.msra.mxu0 %v488
    %1123 = vmatmul.f32.gmra.mxu0 %v1047
    %v1124 = vpop.f32.mrf.mxu0
    %v1125 = vadd.f32 0.0, %v1124
    %1126 = vdwg.mxu0
    %v1127 = vadd.f32 %v486, %v1125
    %v1128 = vxor.u32 %v1127, 2147483648
    %v1129 = vmul.f32 %v1128, 1.442695
    %v1130 = vpow.pop %v1129
    %v1131 = vadd.f32 %v1130, 1.0
    %v1132 = vrcp.pop %v1131
    %v1133 = vmul.f32 %v1131, %v1132
    %v1134 = vsub.f32 1.0, %v1133
    %v1135 = vmul.f32 %v1132, %v1134
    %v1136 = vadd.f32 %v1132, %v1135
    %vm1137 = vweird.f32 %v1131
    %vm1138 = vweird.f32 %v1132
    %vm1139 = vmor %vm1137, %vm1138
    %v1140 = vsel %vm1139, %v1132, %v1136
    %v1141 = vand.u32 2147483647, %v1131
    %vm1142 = vcmp.eq.f32.partialorder %v1141, 8.507059e+37
    %v1143 = vand.u32 %v1131, 2147483648
    %v1144 = vor.u32 1.1754944e-38, %v1143
    %v1145 = vsel %vm1142, %v1144, %v1140
    %v1146 = vmul.f32 1.0, %v1145
    %v1147 = vtanh.pop %v1127
    %v1149 = vrot.slane %v1011, 6
    %v1151 = vmul.f32 %v1146, %v1149
    %1153 = vrot.lane.b32.xlu0 %v1147, 64
    %v1154 = vpop.permute.xlu0 %1153
    %v1156 = vmul.f32 %v1146, %v1154
    %1158 = vrot.lane.b32.xlu0 %v1156, 32
    %v1159 = vpop.permute.xlu0 %1158
    %v1161 = vadd.f32 %v1151, %v1159
    %v1162 = vtanh.pop %v1161
    %1164 = vrot.lane.b32.xlu0 %v1162, 64
    %v1165 = vpop.permute.xlu0 %1164
    %v1167 = vmul.f32 %v1146, %v1165
    %1169 = vrot.lane.b32.xlu0 %v1106, 32
    %v1170 = vpop.permute.xlu0 %1169
    %v1171 = vsel %vm458, %v1170, 0
    %1173 = vmatpush.msra.mxu0 0.0
    %1174 = vmatpush.msra.mxu0 0.0
    %1175 = vmatpush.msra.mxu0 0.0
    %1176 = vmatpush.msra.mxu0 0.0
    %1177 = vmatpush.msra.mxu0 0.0
    %1178 = vmatpush.msra.mxu0 0.0
    %1179 = vmatpush.msra.mxu0 0.0
    %1180 = vmatpush.msra.mxu0 0.0
    %1181 = vmatpush.msra.mxu0 0.0
    %1182 = vmatpush.msra.mxu0 0.0
    %1183 = vmatpush.msra.mxu0 0.0
    %1184 = vmatpush.msra.mxu0 0.0
    %1185 = vmatpush.msra.mxu0 %v556
    %1186 = vmatpush.msra.mxu0 %v555
    %1187 = vmatpush.msra.mxu0 %v554
    %1188 = vmatpush.msra.mxu0 %v553
    %1189 = vmatmul.f32.gmra.mxu0 %v1171
    %v1190 = vpop.f32.mrf.mxu0
    %v1191 = vadd.f32 0.0, %v1190
    %1192 = vdwg.mxu0
    %1194 = vrot.lane.b32.xlu0 %v1167, 32
    %v1195 = vpop.permute.xlu0 %1194
    %v1196 = vsel %vm458, %v1195, 0
    %1198 = vmatpush.msra.mxu0 0.0
    %1199 = vmatpush.msra.mxu0 0.0
    %1200 = vmatpush.msra.mxu0 0.0
    %1201 = vmatpush.msra.mxu0 0.0
    %1202 = vmatpush.msra.mxu0 0.0
    %1203 = vmatpush.msra.mxu0 0.0
    %1204 = vmatpush.msra.mxu0 0.0
    %1205 = vmatpush.msra.mxu0 0.0
    %1206 = vmatpush.msra.mxu0 0.0
    %1207 = vmatpush.msra.mxu0 0.0
    %1208 = vmatpush.msra.mxu0 0.0
    %1209 = vmatpush.msra.mxu0 0.0
    %1210 = vmatpush.msra.mxu0 %v560
    %1211 = vmatpush.msra.mxu0 %v559
    %1212 = vmatpush.msra.mxu0 %v558
    %1213 = vmatpush.msra.mxu0 %v557
    %1214 = vmatmul.f32.gmra.mxu0 %v1196
    %v1215 = vpop.f32.mrf.mxu0
    %v1216 = vadd.f32 %v1191, %v1215
    %1217 = vdwg.mxu0
    %v1218 = vadd.f32 %v1216, %v608
    %v1219 = vxor.u32 %v1218, 2147483648
    %v1220 = vmul.f32 %v1219, 1.442695
    %v1221 = vpow.pop %v1220
    %v1222 = vadd.f32 %v1221, 1.0
    %v1223 = vrcp.pop %v1222
    %v1224 = vmul.f32 %v1222, %v1223
    %v1225 = vsub.f32 1.0, %v1224
    %v1226 = vmul.f32 %v1223, %v1225
    %v1227 = vadd.f32 %v1223, %v1226
    %vm1228 = vweird.f32 %v1222
    %vm1229 = vweird.f32 %v1223
    %vm1230 = vmor %vm1228, %vm1229
    %v1231 = vsel %vm1230, %v1223, %v1227
    %v1232 = vand.u32 2147483647, %v1222
    %vm1233 = vcmp.eq.f32.partialorder %v1232, 8.507059e+37
    %v1234 = vand.u32 %v1222, 2147483648
    %v1235 = vor.u32 1.1754944e-38, %v1234
    %v1236 = vsel %vm1233, %v1235, %v1231
    %v1237 = vmul.f32 1.0, %v1236
    %v1238 = vtanh.pop %v1218
    %v1239 = vmul.f32 %v1237, %v1100
    %1241 = vrot.lane.b32.xlu0 %v1238, 64
    %v1242 = vpop.permute.xlu0 %1241
    %v1244 = vmul.f32 %v1237, %v1242
    %1246 = vrot.lane.b32.xlu0 %v1244, 32
    %v1247 = vpop.permute.xlu0 %1246
    %v1249 = vadd.f32 %v1239, %v1247
    %v1250 = vtanh.pop %v1249
    %1252 = vrot.lane.b32.xlu0 %v1250, 64
    %v1253 = vpop.permute.xlu0 %1252
    %v1255 = vmul.f32 %v1237, %v1253
    %1256 = vmatpush.msra.mxu0 0.0
    %1257 = vmatpush.msra.mxu0 0.0
    %1258 = vmatpush.msra.mxu0 0.0
    %1259 = vmatpush.msra.mxu0 0.0
    %1260 = vmatpush.msra.mxu0 0.0
    %1261 = vmatpush.msra.mxu0 0.0
    %1262 = vmatpush.msra.mxu0 0.0
    %1263 = vmatpush.msra.mxu0 0.0
    %1264 = vmatpush.msra.mxu0 0.0
    %1265 = vmatpush.msra.mxu0 0.0
    %1266 = vmatpush.msra.mxu0 0.0
    %1267 = vmatpush.msra.mxu0 0.0
    %1268 = vmatpush.msra.mxu0 %v491
    %1269 = vmatpush.msra.mxu0 %v490
    %1270 = vmatpush.msra.mxu0 %v489
    %1271 = vmatpush.msra.mxu0 %v488
    %1272 = vmatmul.f32.gmra.mxu0 %v1196
    %v1273 = vpop.f32.mrf.mxu0
    %v1274 = vadd.f32 0.0, %v1273
    %1275 = vdwg.mxu0
    %v1277 = vrot.slane %v1274, 6
    %v1279 = vadd.f32 %v486, %v1277
    %v1280 = vxor.u32 %v1279, 2147483648
    %v1281 = vmul.f32 %v1280, 1.442695
    %v1282 = vpow.pop %v1281
    %v1283 = vadd.f32 %v1282, 1.0
    %v1284 = vrcp.pop %v1283
    %v1285 = vmul.f32 %v1283, %v1284
    %v1286 = vsub.f32 1.0, %v1285
    %v1287 = vmul.f32 %v1284, %v1286
    %v1288 = vadd.f32 %v1284, %v1287
    %vm1289 = vweird.f32 %v1283
    %vm1290 = vweird.f32 %v1284
    %vm1291 = vmor %vm1289, %vm1290
    %v1292 = vsel %vm1291, %v1284, %v1288
    %v1293 = vand.u32 2147483647, %v1283
    %vm1294 = vcmp.eq.f32.partialorder %v1293, 8.507059e+37
    %v1295 = vand.u32 %v1283, 2147483648
    %v1296 = vor.u32 1.1754944e-38, %v1295
    %v1297 = vsel %vm1294, %v1296, %v1292
    %v1298 = vmul.f32 1.0, %v1297
    %v1299 = vtanh.pop %v1279
    %v1301 = vrot.slane %v1161, 6
    %v1303 = vmul.f32 %v1298, %v1301
    %1305 = vrot.lane.b32.xlu0 %v1299, 64
    %v1306 = vpop.permute.xlu0 %1305
    %v1308 = vmul.f32 %v1298, %v1306
    %1310 = vrot.lane.b32.xlu0 %v1308, 32
    %v1311 = vpop.permute.xlu0 %1310
    %v1313 = vadd.f32 %v1303, %v1311
    %v1314 = vtanh.pop %v1313
    %1316 = vrot.lane.b32.xlu0 %v1314, 64
    %v1317 = vpop.permute.xlu0 %1316
    %v1319 = vmul.f32 %v1298, %v1317
    %1321 = vrot.lane.b32.xlu0 %v1255, 32
    %v1322 = vpop.permute.xlu0 %1321
    %v1323 = vsel %vm458, %v1322, 0
    %1325 = vmatpush.msra.mxu0 0.0
    %1326 = vmatpush.msra.mxu0 0.0
    %1327 = vmatpush.msra.mxu0 0.0
    %1328 = vmatpush.msra.mxu0 0.0
    %1329 = vmatpush.msra.mxu0 0.0
    %1330 = vmatpush.msra.mxu0 0.0
    %1331 = vmatpush.msra.mxu0 0.0
    %1332 = vmatpush.msra.mxu0 0.0
    %1333 = vmatpush.msra.mxu0 0.0
    %1334 = vmatpush.msra.mxu0 0.0
    %1335 = vmatpush.msra.mxu0 0.0
    %1336 = vmatpush.msra.mxu0 0.0
    %1337 = vmatpush.msra.mxu0 %v556
    %1338 = vmatpush.msra.mxu0 %v555
    %1339 = vmatpush.msra.mxu0 %v554
    %1340 = vmatpush.msra.mxu0 %v553
    %1341 = vmatmul.f32.gmra.mxu0 %v1323
    %v1342 = vpop.f32.mrf.mxu0
    %v1343 = vadd.f32 0.0, %v1342
    %1344 = vdwg.mxu0
    %v1346 = vrot.slane %v1319, 2
    %1347 = vrot.lane.b32.xlu0 %v1346, 32
    %v1348 = vpop.permute.xlu0 %1347
    %v1349 = vsel %vm458, %v1348, 0
    %1351 = vmatpush.msra.mxu0 0.0
    %1352 = vmatpush.msra.mxu0 0.0
    %1353 = vmatpush.msra.mxu0 0.0
    %1354 = vmatpush.msra.mxu0 0.0
    %1355 = vmatpush.msra.mxu0 0.0
    %1356 = vmatpush.msra.mxu0 0.0
    %1357 = vmatpush.msra.mxu0 0.0
    %1358 = vmatpush.msra.mxu0 0.0
    %1359 = vmatpush.msra.mxu0 0.0
    %1360 = vmatpush.msra.mxu0 0.0
    %1361 = vmatpush.msra.mxu0 0.0
    %1362 = vmatpush.msra.mxu0 0.0
    %1363 = vmatpush.msra.mxu0 %v560
    %1364 = vmatpush.msra.mxu0 %v559
    %1365 = vmatpush.msra.mxu0 %v558
    %1366 = vmatpush.msra.mxu0 %v557
    %1367 = vmatmul.f32.gmra.mxu0 %v1349
    %v1368 = vpop.f32.mrf.mxu0
    %v1369 = vadd.f32 %v1343, %v1368
    %1370 = vdwg.mxu0
    %v1371 = vadd.f32 %v1369, %v608
    %v1372 = vxor.u32 %v1371, 2147483648
    %v1373 = vmul.f32 %v1372, 1.442695
    %v1374 = vpow.pop %v1373
    %v1375 = vadd.f32 %v1374, 1.0
    %v1376 = vrcp.pop %v1375
    %v1377 = vmul.f32 %v1375, %v1376
    %v1378 = vsub.f32 1.0, %v1377
    %v1379 = vmul.f32 %v1376, %v1378
    %v1380 = vadd.f32 %v1376, %v1379
    %vm1381 = vweird.f32 %v1375
    %vm1382 = vweird.f32 %v1376
    %vm1383 = vmor %vm1381, %vm1382
    %v1384 = vsel %vm1383, %v1376, %v1380
    %v1385 = vand.u32 2147483647, %v1375
    %vm1386 = vcmp.eq.f32.partialorder %v1385, 8.507059e+37
    %v1387 = vand.u32 %v1375, 2147483648
    %v1388 = vor.u32 1.1754944e-38, %v1387
    %v1389 = vsel %vm1386, %v1388, %v1384
    %v1390 = vmul.f32 1.0, %v1389
    %v1391 = vtanh.pop %v1371
    %v1392 = vmul.f32 %v1390, %v1249
    %1394 = vrot.lane.b32.xlu0 %v1391, 64
    %v1395 = vpop.permute.xlu0 %1394
    %v1397 = vmul.f32 %v1390, %v1395
    %1399 = vrot.lane.b32.xlu0 %v1397, 32
    %v1400 = vpop.permute.xlu0 %1399
    %v1402 = vadd.f32 %v1392, %v1400
    %v1403 = vtanh.pop %v1402
    %1405 = vrot.lane.b32.xlu0 %v1403, 64
    %v1406 = vpop.permute.xlu0 %1405
    %v1408 = vmul.f32 %v1390, %v1406
    %1409 = vmatpush.msra.mxu0 0.0
    %1410 = vmatpush.msra.mxu0 0.0
    %1411 = vmatpush.msra.mxu0 0.0
    %1412 = vmatpush.msra.mxu0 0.0
    %1413 = vmatpush.msra.mxu0 0.0
    %1414 = vmatpush.msra.mxu0 0.0
    %1415 = vmatpush.msra.mxu0 0.0
    %1416 = vmatpush.msra.mxu0 0.0
    %1417 = vmatpush.msra.mxu0 0.0
    %1418 = vmatpush.msra.mxu0 0.0
    %1419 = vmatpush.msra.mxu0 0.0
    %1420 = vmatpush.msra.mxu0 0.0
    %1421 = vmatpush.msra.mxu0 %v491
    %1422 = vmatpush.msra.mxu0 %v490
    %1423 = vmatpush.msra.mxu0 %v489
    %1424 = vmatpush.msra.mxu0 %v488
    %1425 = vmatmul.f32.gmra.mxu0 %v1349
    %v1426 = vpop.f32.mrf.mxu0
    %v1427 = vadd.f32 0.0, %v1426
    %1428 = vdwg.mxu0
    %v1430 = vrot.slane %v1427, 4
    %v1432 = vadd.f32 %v486, %v1430
    %v1433 = vxor.u32 %v1432, 2147483648
    %v1434 = vmul.f32 %v1433, 1.442695
    %v1435 = vpow.pop %v1434
    %v1436 = vadd.f32 %v1435, 1.0
    %v1437 = vrcp.pop %v1436
    %v1438 = vmul.f32 %v1436, %v1437
    %v1439 = vsub.f32 1.0, %v1438
    %v1440 = vmul.f32 %v1437, %v1439
    %v1441 = vadd.f32 %v1437, %v1440
    %vm1442 = vweird.f32 %v1436
    %vm1443 = vweird.f32 %v1437
    %vm1444 = vmor %vm1442, %vm1443
    %v1445 = vsel %vm1444, %v1437, %v1441
    %v1446 = vand.u32 2147483647, %v1436
    %vm1447 = vcmp.eq.f32.partialorder %v1446, 8.507059e+37
    %v1448 = vand.u32 %v1436, 2147483648
    %v1449 = vor.u32 1.1754944e-38, %v1448
    %v1450 = vsel %vm1447, %v1449, %v1445
    %v1451 = vmul.f32 1.0, %v1450
    %v1452 = vtanh.pop %v1432
    %v1454 = vrot.slane %v1313, 6
    %v1456 = vmul.f32 %v1451, %v1454
    %1458 = vrot.lane.b32.xlu0 %v1452, 64
    %v1459 = vpop.permute.xlu0 %1458
    %v1461 = vmul.f32 %v1451, %v1459
    %1463 = vrot.lane.b32.xlu0 %v1461, 32
    %v1464 = vpop.permute.xlu0 %1463
    %v1466 = vadd.f32 %v1456, %v1464
    %v1467 = vtanh.pop %v1466
    %1469 = vrot.lane.b32.xlu0 %v1467, 64
    %v1470 = vpop.permute.xlu0 %1469
    %v1472 = vmul.f32 %v1451, %v1470
    %1474 = vrot.lane.b32.xlu0 %v1408, 32
    %v1475 = vpop.permute.xlu0 %1474
    %v1476 = vsel %vm458, %v1475, 0
    %1478 = vmatpush.msra.mxu0 0.0
    %1479 = vmatpush.msra.mxu0 0.0
    %1480 = vmatpush.msra.mxu0 0.0
    %1481 = vmatpush.msra.mxu0 0.0
    %1482 = vmatpush.msra.mxu0 0.0
    %1483 = vmatpush.msra.mxu0 0.0
    %1484 = vmatpush.msra.mxu0 0.0
    %1485 = vmatpush.msra.mxu0 0.0
    %1486 = vmatpush.msra.mxu0 0.0
    %1487 = vmatpush.msra.mxu0 0.0
    %1488 = vmatpush.msra.mxu0 0.0
    %1489 = vmatpush.msra.mxu0 0.0
    %1490 = vmatpush.msra.mxu0 %v556
    %1491 = vmatpush.msra.mxu0 %v555
    %1492 = vmatpush.msra.mxu0 %v554
    %1493 = vmatpush.msra.mxu0 %v553
    %1494 = vmatmul.f32.gmra.mxu0 %v1476
    %v1495 = vpop.f32.mrf.mxu0
    %v1496 = vadd.f32 0.0, %v1495
    %1497 = vdwg.mxu0
    %v1499 = vrot.slane %v1472, 4
    %1500 = vrot.lane.b32.xlu0 %v1499, 32
    %v1501 = vpop.permute.xlu0 %1500
    %v1502 = vsel %vm458, %v1501, 0
    %1504 = vmatpush.msra.mxu0 0.0
    %1505 = vmatpush.msra.mxu0 0.0
    %1506 = vmatpush.msra.mxu0 0.0
    %1507 = vmatpush.msra.mxu0 0.0
    %1508 = vmatpush.msra.mxu0 0.0
    %1509 = vmatpush.msra.mxu0 0.0
    %1510 = vmatpush.msra.mxu0 0.0
    %1511 = vmatpush.msra.mxu0 0.0
    %1512 = vmatpush.msra.mxu0 0.0
    %1513 = vmatpush.msra.mxu0 0.0
    %1514 = vmatpush.msra.mxu0 0.0
    %1515 = vmatpush.msra.mxu0 0.0
    %1516 = vmatpush.msra.mxu0 %v560
    %1517 = vmatpush.msra.mxu0 %v559
    %1518 = vmatpush.msra.mxu0 %v558
    %1519 = vmatpush.msra.mxu0 %v557
    %1520 = vmatmul.f32.gmra.mxu0 %v1502
    %v1521 = vpop.f32.mrf.mxu0
    %v1522 = vadd.f32 %v1496, %v1521
    %1523 = vdwg.mxu0
    %v1524 = vadd.f32 %v1522, %v608
    %v1525 = vxor.u32 %v1524, 2147483648
    %v1526 = vmul.f32 %v1525, 1.442695
    %v1527 = vpow.pop %v1526
    %v1528 = vadd.f32 %v1527, 1.0
    %v1529 = vrcp.pop %v1528
    %v1530 = vmul.f32 %v1528, %v1529
    %v1531 = vsub.f32 1.0, %v1530
    %v1532 = vmul.f32 %v1529, %v1531
    %v1533 = vadd.f32 %v1529, %v1532
    %vm1534 = vweird.f32 %v1528
    %vm1535 = vweird.f32 %v1529
    %vm1536 = vmor %vm1534, %vm1535
    %v1537 = vsel %vm1536, %v1529, %v1533
    %v1538 = vand.u32 2147483647, %v1528
    %vm1539 = vcmp.eq.f32.partialorder %v1538, 8.507059e+37
    %v1540 = vand.u32 %v1528, 2147483648
    %v1541 = vor.u32 1.1754944e-38, %v1540
    %v1542 = vsel %vm1539, %v1541, %v1537
    %v1543 = vmul.f32 1.0, %v1542
    %v1544 = vtanh.pop %v1524
    %v1545 = vmul.f32 %v1543, %v1402
    %1547 = vrot.lane.b32.xlu0 %v1544, 64
    %v1548 = vpop.permute.xlu0 %1547
    %v1550 = vmul.f32 %v1543, %v1548
    %1552 = vrot.lane.b32.xlu0 %v1550, 32
    %v1553 = vpop.permute.xlu0 %1552
    %v1555 = vadd.f32 %v1545, %v1553
    %v1556 = vtanh.pop %v1555
    %1558 = vrot.lane.b32.xlu0 %v1556, 64
    %v1559 = vpop.permute.xlu0 %1558
    %v1561 = vmul.f32 %v1543, %v1559
    %1562 = vmatpush.msra.mxu0 0.0
    %1563 = vmatpush.msra.mxu0 0.0
    %1564 = vmatpush.msra.mxu0 0.0
    %1565 = vmatpush.msra.mxu0 0.0
    %1566 = vmatpush.msra.mxu0 0.0
    %1567 = vmatpush.msra.mxu0 0.0
    %1568 = vmatpush.msra.mxu0 0.0
    %1569 = vmatpush.msra.mxu0 0.0
    %1570 = vmatpush.msra.mxu0 0.0
    %1571 = vmatpush.msra.mxu0 0.0
    %1572 = vmatpush.msra.mxu0 0.0
    %1573 = vmatpush.msra.mxu0 0.0
    %1574 = vmatpush.msra.mxu0 %v491
    %1575 = vmatpush.msra.mxu0 %v490
    %1576 = vmatpush.msra.mxu0 %v489
    %1577 = vmatpush.msra.mxu0 %v488
    %1578 = vmatmul.f32.gmra.mxu0 %v1502
    %v1579 = vpop.f32.mrf.mxu0
    %v1580 = vadd.f32 0.0, %v1579
    %1581 = vdwg.mxu0
    %v1583 = vrot.slane %v1580, 2
    %v1585 = vadd.f32 %v486, %v1583
    %v1586 = vxor.u32 %v1585, 2147483648
    %v1587 = vmul.f32 %v1586, 1.442695
    %v1588 = vpow.pop %v1587
    %v1589 = vadd.f32 %v1588, 1.0
    %v1590 = vrcp.pop %v1589
    %v1591 = vmul.f32 %v1589, %v1590
    %v1592 = vsub.f32 1.0, %v1591
    %v1593 = vmul.f32 %v1590, %v1592
    %v1594 = vadd.f32 %v1590, %v1593
    %vm1595 = vweird.f32 %v1589
    %vm1596 = vweird.f32 %v1590
    %vm1597 = vmor %vm1595, %vm1596
    %v1598 = vsel %vm1597, %v1590, %v1594
    %v1599 = vand.u32 2147483647, %v1589
    %vm1600 = vcmp.eq.f32.partialorder %v1599, 8.507059e+37
    %v1601 = vand.u32 %v1589, 2147483648
    %v1602 = vor.u32 1.1754944e-38, %v1601
    %v1603 = vsel %vm1600, %v1602, %v1598
    %v1604 = vmul.f32 1.0, %v1603
    %v1605 = vtanh.pop %v1585
    %v1607 = vrot.slane %v1466, 6
    %v1609 = vmul.f32 %v1604, %v1607
    %1611 = vrot.lane.b32.xlu0 %v1605, 64
    %v1612 = vpop.permute.xlu0 %1611
    %v1614 = vmul.f32 %v1604, %v1612
    %1616 = vrot.lane.b32.xlu0 %v1614, 32
    %v1617 = vpop.permute.xlu0 %1616
    %v1619 = vadd.f32 %v1609, %v1617
    %v1620 = vtanh.pop %v1619
    %1622 = vrot.lane.b32.xlu0 %v1620, 64
    %v1623 = vpop.permute.xlu0 %1622
    %v1625 = vmul.f32 %v1604, %v1623
    %1627 = vrot.lane.b32.xlu0 %v1561, 32
    %v1628 = vpop.permute.xlu0 %1627
    %v1629 = vsel %vm458, %v1628, 0
    %1631 = vmatpush.msra.mxu0 0.0
    %1632 = vmatpush.msra.mxu0 0.0
    %1633 = vmatpush.msra.mxu0 0.0
    %1634 = vmatpush.msra.mxu0 0.0
    %1635 = vmatpush.msra.mxu0 0.0
    %1636 = vmatpush.msra.mxu0 0.0
    %1637 = vmatpush.msra.mxu0 0.0
    %1638 = vmatpush.msra.mxu0 0.0
    %1639 = vmatpush.msra.mxu0 0.0
    %1640 = vmatpush.msra.mxu0 0.0
    %1641 = vmatpush.msra.mxu0 0.0
    %1642 = vmatpush.msra.mxu0 0.0
    %1643 = vmatpush.msra.mxu0 %v556
    %1644 = vmatpush.msra.mxu0 %v555
    %1645 = vmatpush.msra.mxu0 %v554
    %1646 = vmatpush.msra.mxu0 %v553
    %1647 = vmatmul.f32.gmra.mxu0 %v1629
    %v1648 = vpop.f32.mrf.mxu0
    %v1649 = vadd.f32 0.0, %v1648
    %1650 = vdwg.mxu0
    %v1652 = vrot.slane %v1625, 6
    %1653 = vrot.lane.b32.xlu0 %v1652, 32
    %v1654 = vpop.permute.xlu0 %1653
    %v1655 = vsel %vm458, %v1654, 0
    %1657 = vmatpush.msra.mxu0 0.0
    %1658 = vmatpush.msra.mxu0 0.0
    %1659 = vmatpush.msra.mxu0 0.0
    %1660 = vmatpush.msra.mxu0 0.0
    %1661 = vmatpush.msra.mxu0 0.0
    %1662 = vmatpush.msra.mxu0 0.0
    %1663 = vmatpush.msra.mxu0 0.0
    %1664 = vmatpush.msra.mxu0 0.0
    %1665 = vmatpush.msra.mxu0 0.0
    %1666 = vmatpush.msra.mxu0 0.0
    %1667 = vmatpush.msra.mxu0 0.0
    %1668 = vmatpush.msra.mxu0 0.0
    %1669 = vmatpush.msra.mxu0 %v560
    %1670 = vmatpush.msra.mxu0 %v559
    %1671 = vmatpush.msra.mxu0 %v558
    %1672 = vmatpush.msra.mxu0 %v557
    %1673 = vmatmul.f32.gmra.mxu0 %v1655
    %v1674 = vpop.f32.mrf.mxu0
    %v1675 = vadd.f32 %v1649, %v1674
    %1676 = vdwg.mxu0
    %v1677 = vadd.f32 %v1675, %v608
    %v1678 = vxor.u32 %v1677, 2147483648
    %v1679 = vmul.f32 %v1678, 1.442695
    %v1680 = vpow.pop %v1679
    %v1681 = vadd.f32 %v1680, 1.0
    %v1682 = vrcp.pop %v1681
    %v1683 = vmul.f32 %v1681, %v1682
    %v1684 = vsub.f32 1.0, %v1683
    %v1685 = vmul.f32 %v1682, %v1684
    %v1686 = vadd.f32 %v1682, %v1685
    %vm1687 = vweird.f32 %v1681
    %vm1688 = vweird.f32 %v1682
    %vm1689 = vmor %vm1687, %vm1688
    %v1690 = vsel %vm1689, %v1682, %v1686
    %v1691 = vand.u32 2147483647, %v1681
    %vm1692 = vcmp.eq.f32.partialorder %v1691, 8.507059e+37
    %v1693 = vand.u32 %v1681, 2147483648
    %v1694 = vor.u32 1.1754944e-38, %v1693
    %v1695 = vsel %vm1692, %v1694, %v1690
    %v1696 = vmul.f32 1.0, %v1695
    %v1697 = vtanh.pop %v1677
    %v1698 = vmul.f32 %v1696, %v1555
    %1700 = vrot.lane.b32.xlu0 %v1697, 64
    %v1701 = vpop.permute.xlu0 %1700
    %v1703 = vmul.f32 %v1696, %v1701
    %1705 = vrot.lane.b32.xlu0 %v1703, 32
    %v1706 = vpop.permute.xlu0 %1705
    %v1708 = vadd.f32 %v1698, %v1706
    %v1709 = vtanh.pop %v1708
    %1711 = vrot.lane.b32.xlu0 %v1709, 64
    %v1712 = vpop.permute.xlu0 %1711
    %v1714 = vmul.f32 %v1696, %v1712
    %v1715 = vld [vmem:[%s11] sm:$0xff]
    %v1716 = vld [vmem:[%s11 + $0x8] sm:$0xff]
    %v1717 = vld [vmem:[%s11 + $0x10] sm:$0xff]
    %v1718 = vld [vmem:[%s11 + $0x18] sm:$0xff]
    %v1719 = vld [vmem:[#allocation2] sm:$0x1]
    %v1721 = vperm.slane %v1719, 0
    %1724 = vrot.lane.b32.xlu0 %v1714, 32
    %v1725 = vpop.permute.xlu0 %1724
    %v1726 = vsel %vm458, %v1725, 0
    %1728 = vmatpush.msra.mxu0 0.0
    %1729 = vmatpush.msra.mxu0 0.0
    %1730 = vmatpush.msra.mxu0 0.0
    %1731 = vmatpush.msra.mxu0 0.0
    %1732 = vmatpush.msra.mxu0 0.0
    %1733 = vmatpush.msra.mxu0 0.0
    %1734 = vmatpush.msra.mxu0 0.0
    %1735 = vmatpush.msra.mxu0 0.0
    %1736 = vmatpush.msra.mxu0 0.0
    %1737 = vmatpush.msra.mxu0 0.0
    %1738 = vmatpush.msra.mxu0 0.0
    %1739 = vmatpush.msra.mxu0 0.0
    %1740 = vmatpush.msra.mxu0 %v1718
    %1741 = vmatpush.msra.mxu0 %v1717
    %1742 = vmatpush.msra.mxu0 %v1716
    %1743 = vmatpush.msra.mxu0 %v1715
    %1744 = vmatmul.f32.gmra.mxu0 %v1726
    %v1745 = vpop.f32.mrf.mxu0
    %v1746 = vadd.f32 %v1721, %v1745
    %1747 = vdwg.mxu0
    %vm1748 = vcmask 1024
    %1749 = vst.msk [vmem:[%s13] sm:$0x3] %vm1748, %v1746
    // Predicated region
    $region74: #{tpu_custom_call.1} parent=1 // pred_check
      _
    $region75: #{tpu_custom_call.1} parent=1 // pred_check_branch
      %1751 = sbr.rel (0) target = $region77
    $region76: #{tpu_custom_call.1} parent=1 // pred_region
      _
    $region77: #{tpu_custom_call.1} parent=1 // pred_fallthru
      _
    // Predicated region
    $region78: #{tpu_custom_call.1} parent=1 // pred_check
      _
    $region79: #{tpu_custom_call.1} parent=1 // pred_check_branch
      %1753 = sbr.rel (0) target = $region81
    $region80: #{tpu_custom_call.1} parent=1 // pred_region
      _
    $region81: #{tpu_custom_call.1} parent=1 // pred_fallthru
      _
    %1754 = vsyncpa [#allocation4], 1
    %1755 = vsyncpa [#allocation6], 1
    %1756 = vsyncpa [#allocation9], 1

</llo_original>
